<compile_context>
chip_gen: v7x
topology: tpu7x:2x2x1
jax: 0.10.0
libtpu: 0.0.40
codegen_flags: <defaults>
</compile_context>

<pallas_src>
import functools

import jax
import jax.numpy as jnp
from jax.experimental import pallas as pl
from jax.experimental.pallas import tpu as pltpu


def _round_up(x, m):
    return ((x + m - 1) // m) * m


def _pad_to(x, shape):
    pads = [(0, t - s) for s, t in zip(x.shape, shape)]
    if all(p == (0, 0) for p in pads):
        return x
    return jnp.pad(x, pads)


def _gn_relu(x, gamma, beta, inv_n, eps=1e-5):
    """GroupNorm(num_groups=1) + ReLU on a (rows, C) tile.

    One-pass statistics (mean, E[x^2]); `inv_n` = 1/n_valid so zero-padded
    lanes do not skew the statistics; gamma/beta are zero on padded lanes so
    those lanes stay exactly 0.  rsqrt goes to the EUP slot.
    """
    s1 = jnp.sum(x, axis=-1, keepdims=True) * inv_n            # mean
    s2 = jnp.sum(x * x, axis=-1, keepdims=True) * inv_n        # E[x^2]
    var = jnp.maximum(s2 - s1 * s1, 0.0)
    y = (x - s1) * jax.lax.rsqrt(var + eps) * gamma + beta
    return jnp.maximum(y, 0.0)


def _attdest_kernel(n_valid, num_mods, fuse_concat,
                    geo_ref, agts_ref,
                    w1_ref, b1_ref,
                    w2_ref, g2_ref, b2_ref,
                    w3_ref, g3_ref, b3_ref,
                    out_ref, *scratch):
    C = agts_ref.shape[1]
    inv_n = jnp.float32(1.0 / n_valid)

    geo = geo_ref[...]                           # (ta, 2 + 2*num_mods) f32
    cx = geo[:, 0:1]
    cy = geo[:, 1:2]

    w1x = w1_ref[0:1, :]                         # (1, C) f32
    w1y = w1_ref[1:2, :]                         # (1, C) f32
    b1 = b1_ref[...]
    w2 = w2_ref[...]
    g2 = g2_ref[...]
    b2 = b2_ref[...]
    g3 = g3_ref[...]
    b3 = b3_ref[...]
    agts = agts_ref[...]                         # (ta, C) matmul_dtype

    if fuse_concat:
        # v6e/v7x: one K=2C dot through a concat scratch; agts half is
        # mode-invariant, written once per tile.
        cat = scratch[0]                         # (ta, 2C) matmul_dtype
        cat[:, C:2 * C] = agts
        w3 = w3_ref[...]                         # (2C, C)
    else:
        # v5e: split matmuls; agts contribution computed once and reused.
        w3d = w3_ref[0:C, :]                     # (C, C)
        w3a = w3_ref[C:2 * C, :]                 # (C, C)
        a3 = jnp.dot(agts, w3a, preferred_element_type=jnp.float32)

    # TODO(synk): switch to lax.fori_loop / M-stacked matmuls if num_mods ever
    # grows beyond ~8 (vreg live-range pressure from the static unroll).
    for m in range(num_mods):                    # static unroll (small)
        dx = cx - geo[:, 2 + 2 * m:3 + 2 * m]    # (ta, 1)
        dy = cy - geo[:, 3 + 2 * m:4 + 2 * m]    # (ta, 1)

        # Linear(2, n_agt) + bias + ReLU: K=2 -> VPU outer product (no MXU).
        h = jnp.maximum(dx * w1x + dy * w1y + b1, 0.0)          # (ta, C) f32

        # Linear(n_agt, n_agt, no bias) -> GN(1) -> ReLU
        h = jnp.dot(h.astype(w2.dtype), w2,
                    preferred_element_type=jnp.float32)
        h = _gn_relu(h, g2, b2, inv_n)

        # Linear(2*n_agt, n_agt, no bias) on concat(dist_feat, agts)
        if fuse_concat:
            cat[:, 0:C] = h.astype(cat.dtype)
            z = jnp.dot(cat[...], w3, preferred_element_type=jnp.float32)
        else:
            z = jnp.dot(h.astype(w3d.dtype), w3d,
                        preferred_element_type=jnp.float32) + a3
        z = _gn_relu(z, g3, b3, inv_n)

        # Lane-stacked dense store: static 128-aligned lane offset.
        out_ref[:, m * C:(m + 1) * C] = z.astype(out_ref.dtype)


def _default_fuse_concat():
    # v6e/v7x MXUs are 256-deep, so a K=2C dot costs ~ the same MXU time as a
    # K=C dot (the agts half is free).  v5e's MXU is 128-deep: keep the split
    # path with the mode-invariant a3 reuse there.
    try:
        kind = jax.devices()[0].device_kind.lower()
    except Exception:
        return True
    return "v5" not in kind


def att_dest_forward(agts, agt_ctrs, dest_ctrs, params, *,
                     agt_tile=1024,
                     matmul_dtype=jnp.bfloat16,
                     out_dtype=jnp.float32,
                     fuse_concat=None,
                     vmem_limit_bytes=None):
    """agts: (N, n_agt), agt_ctrs: (N, 2), dest_ctrs: (N, num_mods, 2)
       returns (N * num_mods, n_agt) in `out_dtype` (torch row order).

    Note: matmul_dtype=bfloat16 (default) casts the weights themselves to bf16
    (f32 accumulation + f32 GroupNorm), so results drift slightly from a pure
    f32 reference; pass matmul_dtype=jnp.float32 for bit-closer results.
    """
    N, n_agt = agts.shape
    num_mods = dest_ctrs.shape[1]
    if fuse_concat is None:
        fuse_concat = _default_fuse_concat()

    f32 = jnp.float32
    C = _round_up(n_agt, 128)                    # lane-dense feature width

    # Tile over agents; keep >= 2 grid steps when N allows it so the
    # "parallel" grid axis can shard across v7x's two TensorCores.
    N8 = _round_up(N, 8)
    ta = min(agt_tile, N8)
    if N8 > 8:
        ta = min(ta, _round_up((N8 + 1) // 2, 8))
    ta = _round_up(max(ta, 8), 8)
    N_pad = _round_up(N8, ta)

    (w1, b1, w2, g2, b2, w3, g3, b3) = params

    # Zero-pad features to C lanes.  Zero weights/bias/gamma/beta on padded
    # lanes keep every padded lane exactly 0 through the whole pipeline.
    w1_p = _pad_to(w1.astype(f32), (2, C))
    b1_p = _pad_to(b1.astype(f32).reshape(1, -1), (1, C))
    w2_p = _pad_to(w2.astype(f32), (C, C)).astype(matmul_dtype)
    g2_p = _pad_to(g2.astype(f32).reshape(1, -1), (1, C))
    b2_p = _pad_to(b2.astype(f32).reshape(1, -1), (1, C))
    w3d_p = _pad_to(w3[:n_agt].astype(f32), (C, C))
    w3a_p = _pad_to(w3[n_agt:].astype(f32), (C, C))
    w3_p = jnp.concatenate([w3d_p, w3a_p], axis=0).astype(matmul_dtype)
    g3_p = _pad_to(g3.astype(f32).reshape(1, -1), (1, C))
    b3_p = _pad_to(b3.astype(f32).reshape(1, -1), (1, C))

    agts_p = _pad_to(agts.astype(f32), (N_pad, C)).astype(matmul_dtype)
    # Flatten [agt_ctrs | dest_ctrs] into one small lane-stacked f32 array.
    geo = jnp.concatenate(
        [agt_ctrs.astype(f32), dest_ctrs.astype(f32).reshape(N, 2 * num_mods)],
        axis=1)
    geo_p = _pad_to(geo, (N_pad, 2 + 2 * num_mods))

    def full(shape):
        return pl.BlockSpec(shape, lambda i: (0,) * len(shape))

    scratch_shapes = []
    if fuse_concat:
        scratch_shapes.append(pltpu.VMEM((ta, 2 * C), matmul_dtype))

    cp_kwargs = dict(dimension_semantics=("parallel",))
    if vmem_limit_bytes is not None:
        cp_kwargs["vmem_limit_bytes"] = vmem_limit_bytes

    out_p = pl.pallas_call(
        functools.partial(_attdest_kernel, n_agt, num_mods, fuse_concat),
        out_shape=jax.ShapeDtypeStruct((N_pad, num_mods * C), out_dtype),
        grid=(N_pad // ta,),
        in_specs=[
            pl.BlockSpec((ta, 2 + 2 * num_mods), lambda i: (i, 0)),  # geo
            pl.BlockSpec((ta, C), lambda i: (i, 0)),                 # agts
            full(w1_p.shape), full(b1_p.shape),
            full(w2_p.shape), full(g2_p.shape), full(b2_p.shape),
            full(w3_p.shape), full(g3_p.shape), full(b3_p.shape),
        ],
        out_specs=pl.BlockSpec((ta, num_mods * C), lambda i: (i, 0)),
        scratch_shapes=scratch_shapes,
        compiler_params=pltpu.CompilerParams(**cp_kwargs),
    )(geo_p, agts_p, w1_p, b1_p, w2_p, g2_p, b2_p, w3_p, g3_p, b3_p)

    # (N_pad, num_mods*C) -> (N_pad, num_mods, C) is a free row-major view, so
    # slicing + reshape reproduces torch's .view(-1, n_agt) row ordering
    # (agent-major, mode-minor).
    out = out_p.reshape(N_pad, num_mods, C)[:N, :, :n_agt]
    return out.reshape(N * num_mods, n_agt)


def _reference(agts, agt_ctrs, dest_ctrs, params, eps=1e-5):
    # Pure-JAX reference with torch-style (two-pass, biased-var) GroupNorm.
    (w1, b1, w2, g2, b2, w3, g3, b3) = params
    N, n_agt = agts.shape
    num_mods = dest_ctrs.shape[1]

    def gn(x, gamma, beta):
        mean = jnp.mean(x, axis=-1, keepdims=True)
        var = jnp.mean((x - mean) ** 2, axis=-1, keepdims=True)
        return (x - mean) * jax.lax.rsqrt(var + eps) * gamma + beta

    dist = (agt_ctrs[:, None, :] - dest_ctrs).reshape(-1, 2)
    h = jnp.maximum(dist @ w1 + b1, 0.0)
    h = jnp.maximum(gn(h @ w2, g2, b2), 0.0)
    a = jnp.repeat(agts[:, None, :], num_mods, axis=1).reshape(-1, n_agt)
    cat = jnp.concatenate([h, a], axis=1)
    z = jnp.maximum(gn(cat @ w3, g3, b3), 0.0)
    return z


def init_params(key, n_agt):
    ks = jax.random.split(key, 4)
    scale = 0.1
    w1 = scale * jax.random.normal(ks[0], (2, n_agt), jnp.float32)
    b1 = scale * jax.random.normal(ks[1], (1, n_agt), jnp.float32)
    w2 = scale * jax.random.normal(ks[2], (n_agt, n_agt), jnp.float32)
    g2 = jnp.ones((1, n_agt), jnp.float32)
    b2 = jnp.zeros((1, n_agt), jnp.float32)
    w3 = scale * jax.random.normal(ks[3], (2 * n_agt, n_agt), jnp.float32)
    g3 = jnp.ones((1, n_agt), jnp.float32)
    b3 = jnp.zeros((1, n_agt), jnp.float32)
    return (w1, b1, w2, g2, b2, w3, g3, b3)


if __name__ == "__main__":
    key = jax.random.PRNGKey(0)
    N, num_mods, n_agt = 4, 6, 32   # small shapes; rows = N * num_mods = 24

    k1, k2, k3, kp = jax.random.split(key, 4)
    agts = jax.random.normal(k1, (N, n_agt), jnp.float32)
    agt_ctrs = jax.random.normal(k2, (N, 2), jnp.float32)
    dest_ctrs = jax.random.normal(k3, (N, num_mods, 2), jnp.float32)
    params = init_params(kp, n_agt)

    ref = _reference(agts, agt_ctrs, dest_ctrs, params)

    # f32 operands; exercise both stage-3 formulations (fused K=2C dot and
    # the split + a3-reuse path) regardless of the chip we run on.
    for fuse in (True, False):
        out = jax.block_until_ready(
            att_dest_forward(agts, agt_ctrs, dest_ctrs, params,
                             matmul_dtype=jnp.float32, fuse_concat=fuse))
        assert out.shape == (N * num_mods, n_agt)
        assert jnp.allclose(out, ref, atol=3e-5, rtol=3e-5), f"f32 fuse={fuse}"

    # Default path: bf16 matmul operands (f32 accumulation + f32 GroupNorm).
    out_bf = jax.block_until_ready(
        att_dest_forward(agts, agt_ctrs, dest_ctrs, params))
    assert jnp.allclose(out_bf, ref, atol=5e-2, rtol=5e-2)

    # bf16 output variant (halves the dominant HBM write).
    out_b16 = jax.block_until_ready(
        att_dest_forward(agts, agt_ctrs, dest_ctrs, params,
                         out_dtype=jnp.bfloat16))
    assert out_b16.dtype == jnp.bfloat16
    assert jnp.allclose(out_b16.astype(jnp.float32), ref, atol=6e-2, rtol=6e-2)

    # Multi-grid-step + row-padding path (small forced tile -> grid > 1).
    N2 = 20
    k4, k5, k6 = jax.random.split(jax.random.PRNGKey(1), 3)
    agts2 = jax.random.normal(k4, (N2, n_agt), jnp.float32)
    ctrs2 = jax.random.normal(k5, (N2, 2), jnp.float32)
    dest2 = jax.random.normal(k6, (N2, num_mods, 2), jnp.float32)
    out2 = jax.block_until_ready(
        att_dest_forward(agts2, ctrs2, dest2, params,
                         agt_tile=8, matmul_dtype=jnp.float32))
    ref2 = _reference(agts2, ctrs2, dest2, params)
    assert jnp.allclose(out2, ref2, atol=3e-5, rtol=3e-5)

    print("KERNEL_OK")
</pallas_src>

<mosaic_0001>
module attributes {stable_mosaic.version = 11 : i64} {
  func.func @_attdest_kernel(%arg0: i32, %arg1: memref<8x14xf32, #tpu.memory_space<vmem>>, %arg2: memref<8x128xf32, #tpu.memory_space<vmem>>, %arg3: memref<2x128xf32, #tpu.memory_space<vmem>>, %arg4: memref<1x128xf32, #tpu.memory_space<vmem>>, %arg5: memref<128x128xf32, #tpu.memory_space<vmem>>, %arg6: memref<1x128xf32, #tpu.memory_space<vmem>>, %arg7: memref<1x128xf32, #tpu.memory_space<vmem>>, %arg8: memref<256x128xf32, #tpu.memory_space<vmem>>, %arg9: memref<1x128xf32, #tpu.memory_space<vmem>>, %arg10: memref<1x128xf32, #tpu.memory_space<vmem>>, %arg11: memref<8x768xf32, #tpu.memory_space<vmem>>, %arg12: memref<8x256xf32, #tpu.memory_space<vmem>>) attributes {dimension_semantics = [#tpu.dimension_semantics<parallel>], iteration_bounds = array<i64: 1>, scalar_prefetch = 0 : i64, scratch_operands = 1 : i64, tpu.core_type = #tpu.core_type<tc>, window_params = [{transform_indices = @transform_0, window_bounds = array<i64: 8, 14>}, {transform_indices = @transform_1, window_bounds = array<i64: 8, 128>}, {pipeline_mode = #tpu.pipeline_mode<synchronous>, transform_indices = @transform_2, window_bounds = array<i64: 2, 128>}, {pipeline_mode = #tpu.pipeline_mode<synchronous>, transform_indices = @transform_3, window_bounds = array<i64: 1, 128>}, {pipeline_mode = #tpu.pipeline_mode<synchronous>, transform_indices = @transform_4, window_bounds = array<i64: 128, 128>}, {pipeline_mode = #tpu.pipeline_mode<synchronous>, transform_indices = @transform_5, window_bounds = array<i64: 1, 128>}, {pipeline_mode = #tpu.pipeline_mode<synchronous>, transform_indices = @transform_6, window_bounds = array<i64: 1, 128>}, {pipeline_mode = #tpu.pipeline_mode<synchronous>, transform_indices = @transform_7, window_bounds = array<i64: 256, 128>}, {pipeline_mode = #tpu.pipeline_mode<synchronous>, transform_indices = @transform_8, window_bounds = array<i64: 1, 128>}, {pipeline_mode = #tpu.pipeline_mode<synchronous>, transform_indices = @transform_9, window_bounds = array<i64: 1, 128>}, {transform_indices = @transform_10, window_bounds = array<i64: 8, 768>}]} {
    %c0 = arith.constant 0 : index
    %c0_0 = arith.constant 0 : index
    %0 = vector.load %arg1[%c0, %c0_0] : memref<8x14xf32, #tpu.memory_space<vmem>>, vector<8x14xf32>
    %1 = vector.extract_strided_slice %0 {offsets = [0, 0], sizes = [8, 1], strides = [1, 1]} : vector<8x14xf32> to vector<8x1xf32>
    %2 = vector.extract_strided_slice %0 {offsets = [0, 1], sizes = [8, 1], strides = [1, 1]} : vector<8x14xf32> to vector<8x1xf32>
    %c0_1 = arith.constant 0 : index
    %c0_2 = arith.constant 0 : index
    %3 = vector.load %arg3[%c0_1, %c0_2] : memref<2x128xf32, #tpu.memory_space<vmem>>, vector<1x128xf32>
    %c1 = arith.constant 1 : index
    %c0_3 = arith.constant 0 : index
    %4 = vector.load %arg3[%c1, %c0_3] : memref<2x128xf32, #tpu.memory_space<vmem>>, vector<1x128xf32>
    %c0_4 = arith.constant 0 : index
    %c0_5 = arith.constant 0 : index
    %5 = vector.load %arg4[%c0_4, %c0_5] : memref<1x128xf32, #tpu.memory_space<vmem>>, vector<1x128xf32>
    %c0_6 = arith.constant 0 : index
    %c0_7 = arith.constant 0 : index
    %6 = vector.load %arg5[%c0_6, %c0_7] : memref<128x128xf32, #tpu.memory_space<vmem>>, vector<128x128xf32>
    %c0_8 = arith.constant 0 : index
    %c0_9 = arith.constant 0 : index
    %7 = vector.load %arg6[%c0_8, %c0_9] : memref<1x128xf32, #tpu.memory_space<vmem>>, vector<1x128xf32>
    %c0_10 = arith.constant 0 : index
    %c0_11 = arith.constant 0 : index
    %8 = vector.load %arg7[%c0_10, %c0_11] : memref<1x128xf32, #tpu.memory_space<vmem>>, vector<1x128xf32>
    %c0_12 = arith.constant 0 : index
    %c0_13 = arith.constant 0 : index
    %9 = vector.load %arg9[%c0_12, %c0_13] : memref<1x128xf32, #tpu.memory_space<vmem>>, vector<1x128xf32>
    %c0_14 = arith.constant 0 : index
    %c0_15 = arith.constant 0 : index
    %10 = vector.load %arg10[%c0_14, %c0_15] : memref<1x128xf32, #tpu.memory_space<vmem>>, vector<1x128xf32>
    %c0_16 = arith.constant 0 : index
    %c0_17 = arith.constant 0 : index
    %11 = vector.load %arg2[%c0_16, %c0_17] : memref<8x128xf32, #tpu.memory_space<vmem>>, vector<8x128xf32>
    %c0_18 = arith.constant 0 : index
    %c128 = arith.constant 128 : index
    %12 = vector.load %arg12[%c0_18, %c128] : memref<8x256xf32, #tpu.memory_space<vmem>>, vector<8x128xf32>
    tpu.vector_store %arg12[%c0_18, %c128], %11 {strides = array<i32>} : memref<8x256xf32, #tpu.memory_space<vmem>>, vector<8x128xf32>,
    %c0_19 = arith.constant 0 : index
    %c0_20 = arith.constant 0 : index
    %13 = vector.load %arg8[%c0_19, %c0_20] : memref<256x128xf32, #tpu.memory_space<vmem>>, vector<256x128xf32>
    %14 = vector.extract_strided_slice %0 {offsets = [0, 2], sizes = [8, 1], strides = [1, 1]} : vector<8x14xf32> to vector<8x1xf32>
    %15 = arith.subf %1, %14 : vector<8x1xf32>
    %16 = vector.extract_strided_slice %0 {offsets = [0, 3], sizes = [8, 1], strides = [1, 1]} : vector<8x14xf32> to vector<8x1xf32>
    %17 = arith.subf %2, %16 : vector<8x1xf32>
    %18 = vector.broadcast %15 : vector<8x1xf32> to vector<8x128xf32>
    %19 = vector.broadcast %3 : vector<1x128xf32> to vector<8x128xf32>
    %20 = arith.mulf %18, %19 : vector<8x128xf32>
    %21 = vector.broadcast %17 : vector<8x1xf32> to vector<8x128xf32>
    %22 = vector.broadcast %4 : vector<1x128xf32> to vector<8x128xf32>
    %23 = arith.mulf %21, %22 : vector<8x128xf32>
    %24 = arith.addf %20, %23 : vector<8x128xf32>
    %25 = vector.broadcast %5 : vector<1x128xf32> to vector<8x128xf32>
    %26 = arith.addf %24, %25 : vector<8x128xf32>
    %cst = arith.constant 0.000000e+00 : f32
    %27 = vector.broadcast %cst : f32 to vector<8x128xf32>
    %28 = arith.maximumf %26, %27 : vector<8x128xf32>
    %cst_21 = arith.constant dense<0.000000e+00> : vector<8x128xf32>
    %29 = tpu.matmul %28, %6, %cst_21 {dimension_numbers = #tpu.dot_dimension_numbers<[1], [0], [0], [1], [0, 0, 1, 1], [], []>} : vector<8x128xf32>, vector<128x128xf32>, vector<8x128xf32> -> vector<8x128xf32>
    %cst_22 = arith.constant dense<0.000000e+00> : vector<8xf32>
    %30 = vector.multi_reduction <add>, %29, %cst_22 [1] : vector<8x128xf32> to vector<8xf32>
    %31 = vector.shape_cast %30 : vector<8xf32> to vector<8x1xf32>
    %cst_23 = arith.constant 3.125000e-02 : f32
    %32 = vector.broadcast %cst_23 : f32 to vector<8x1xf32>
    %33 = arith.mulf %31, %32 : vector<8x1xf32>
    %34 = arith.mulf %29, %29 : vector<8x128xf32>
    %cst_24 = arith.constant dense<0.000000e+00> : vector<8xf32>
    %35 = vector.multi_reduction <add>, %34, %cst_24 [1] : vector<8x128xf32> to vector<8xf32>
    %36 = vector.shape_cast %35 : vector<8xf32> to vector<8x1xf32>
    %cst_25 = arith.constant 3.125000e-02 : f32
    %37 = vector.broadcast %cst_25 : f32 to vector<8x1xf32>
    %38 = arith.mulf %36, %37 : vector<8x1xf32>
    %39 = arith.mulf %33, %33 : vector<8x1xf32>
    %40 = arith.subf %38, %39 : vector<8x1xf32>
    %cst_26 = arith.constant 0.000000e+00 : f32
    %41 = vector.broadcast %cst_26 : f32 to vector<8x1xf32>
    %42 = arith.maximumf %40, %41 : vector<8x1xf32>
    %43 = vector.broadcast %33 : vector<8x1xf32> to vector<8x128xf32>
    %44 = arith.subf %29, %43 : vector<8x128xf32>
    %cst_27 = arith.constant 9.99999974E-6 : f32
    %45 = vector.broadcast %cst_27 : f32 to vector<8x1xf32>
    %46 = arith.addf %42, %45 : vector<8x1xf32>
    %47 = math.rsqrt %46 : vector<8x1xf32>
    %48 = vector.broadcast %47 : vector<8x1xf32> to vector<8x128xf32>
    %49 = arith.mulf %44, %48 : vector<8x128xf32>
    %50 = vector.broadcast %7 : vector<1x128xf32> to vector<8x128xf32>
    %51 = arith.mulf %49, %50 : vector<8x128xf32>
    %52 = vector.broadcast %8 : vector<1x128xf32> to vector<8x128xf32>
    %53 = arith.addf %51, %52 : vector<8x128xf32>
    %cst_28 = arith.constant 0.000000e+00 : f32
    %54 = vector.broadcast %cst_28 : f32 to vector<8x128xf32>
    %55 = arith.maximumf %53, %54 : vector<8x128xf32>
    %c0_29 = arith.constant 0 : index
    %c0_30 = arith.constant 0 : index
    %56 = vector.load %arg12[%c0_29, %c0_30] : memref<8x256xf32, #tpu.memory_space<vmem>>, vector<8x128xf32>
    tpu.vector_store %arg12[%c0_29, %c0_30], %55 {strides = array<i32>} : memref<8x256xf32, #tpu.memory_space<vmem>>, vector<8x128xf32>,
    %c0_31 = arith.constant 0 : index
    %c0_32 = arith.constant 0 : index
    %57 = vector.load %arg12[%c0_31, %c0_32] : memref<8x256xf32, #tpu.memory_space<vmem>>, vector<8x256xf32>
    %cst_33 = arith.constant dense<0.000000e+00> : vector<8x128xf32>
    %58 = tpu.matmul %57, %13, %cst_33 {dimension_numbers = #tpu.dot_dimension_numbers<[1], [0], [0], [1], [0, 0, 1, 1], [], []>} : vector<8x256xf32>, vector<256x128xf32>, vector<8x128xf32> -> vector<8x128xf32>
    %cst_34 = arith.constant dense<0.000000e+00> : vector<8xf32>
    %59 = vector.multi_reduction <add>, %58, %cst_34 [1] : vector<8x128xf32> to vector<8xf32>
    %60 = vector.shape_cast %59 : vector<8xf32> to vector<8x1xf32>
    %cst_35 = arith.constant 3.125000e-02 : f32
    %61 = vector.broadcast %cst_35 : f32 to vector<8x1xf32>
    %62 = arith.mulf %60, %61 : vector<8x1xf32>
    %63 = arith.mulf %58, %58 : vector<8x128xf32>
    %cst_36 = arith.constant dense<0.000000e+00> : vector<8xf32>
    %64 = vector.multi_reduction <add>, %63, %cst_36 [1] : vector<8x128xf32> to vector<8xf32>
    %65 = vector.shape_cast %64 : vector<8xf32> to vector<8x1xf32>
    %cst_37 = arith.constant 3.125000e-02 : f32
    %66 = vector.broadcast %cst_37 : f32 to vector<8x1xf32>
    %67 = arith.mulf %65, %66 : vector<8x1xf32>
    %68 = arith.mulf %62, %62 : vector<8x1xf32>
    %69 = arith.subf %67, %68 : vector<8x1xf32>
    %cst_38 = arith.constant 0.000000e+00 : f32
    %70 = vector.broadcast %cst_38 : f32 to vector<8x1xf32>
    %71 = arith.maximumf %69, %70 : vector<8x1xf32>
    %72 = vector.broadcast %62 : vector<8x1xf32> to vector<8x128xf32>
    %73 = arith.subf %58, %72 : vector<8x128xf32>
    %cst_39 = arith.constant 9.99999974E-6 : f32
    %74 = vector.broadcast %cst_39 : f32 to vector<8x1xf32>
    %75 = arith.addf %71, %74 : vector<8x1xf32>
    %76 = math.rsqrt %75 : vector<8x1xf32>
    %77 = vector.broadcast %76 : vector<8x1xf32> to vector<8x128xf32>
    %78 = arith.mulf %73, %77 : vector<8x128xf32>
    %79 = vector.broadcast %9 : vector<1x128xf32> to vector<8x128xf32>
    %80 = arith.mulf %78, %79 : vector<8x128xf32>
    %81 = vector.broadcast %10 : vector<1x128xf32> to vector<8x128xf32>
    %82 = arith.addf %80, %81 : vector<8x128xf32>
    %cst_40 = arith.constant 0.000000e+00 : f32
    %83 = vector.broadcast %cst_40 : f32 to vector<8x128xf32>
    %84 = arith.maximumf %82, %83 : vector<8x128xf32>
    %c0_41 = arith.constant 0 : index
    %c0_42 = arith.constant 0 : index
    %85 = vector.load %arg11[%c0_41, %c0_42] : memref<8x768xf32, #tpu.memory_space<vmem>>, vector<8x128xf32>
    tpu.vector_store %arg11[%c0_41, %c0_42], %84 {strides = array<i32>} : memref<8x768xf32, #tpu.memory_space<vmem>>, vector<8x128xf32>,
    %86 = vector.extract_strided_slice %0 {offsets = [0, 4], sizes = [8, 1], strides = [1, 1]} : vector<8x14xf32> to vector<8x1xf32>
    %87 = arith.subf %1, %86 : vector<8x1xf32>
    %88 = vector.extract_strided_slice %0 {offsets = [0, 5], sizes = [8, 1], strides = [1, 1]} : vector<8x14xf32> to vector<8x1xf32>
    %89 = arith.subf %2, %88 : vector<8x1xf32>
    %90 = vector.broadcast %87 : vector<8x1xf32> to vector<8x128xf32>
    %91 = vector.broadcast %3 : vector<1x128xf32> to vector<8x128xf32>
    %92 = arith.mulf %90, %91 : vector<8x128xf32>
    %93 = vector.broadcast %89 : vector<8x1xf32> to vector<8x128xf32>
    %94 = vector.broadcast %4 : vector<1x128xf32> to vector<8x128xf32>
    %95 = arith.mulf %93, %94 : vector<8x128xf32>
    %96 = arith.addf %92, %95 : vector<8x128xf32>
    %97 = vector.broadcast %5 : vector<1x128xf32> to vector<8x128xf32>
    %98 = arith.addf %96, %97 : vector<8x128xf32>
    %cst_43 = arith.constant 0.000000e+00 : f32
    %99 = vector.broadcast %cst_43 : f32 to vector<8x128xf32>
    %100 = arith.maximumf %98, %99 : vector<8x128xf32>
    %cst_44 = arith.constant dense<0.000000e+00> : vector<8x128xf32>
    %101 = tpu.matmul %100, %6, %cst_44 {dimension_numbers = #tpu.dot_dimension_numbers<[1], [0], [0], [1], [0, 0, 1, 1], [], []>} : vector<8x128xf32>, vector<128x128xf32>, vector<8x128xf32> -> vector<8x128xf32>
    %cst_45 = arith.constant dense<0.000000e+00> : vector<8xf32>
    %102 = vector.multi_reduction <add>, %101, %cst_45 [1] : vector<8x128xf32> to vector<8xf32>
    %103 = vector.shape_cast %102 : vector<8xf32> to vector<8x1xf32>
    %cst_46 = arith.constant 3.125000e-02 : f32
    %104 = vector.broadcast %cst_46 : f32 to vector<8x1xf32>
    %105 = arith.mulf %103, %104 : vector<8x1xf32>
    %106 = arith.mulf %101, %101 : vector<8x128xf32>
    %cst_47 = arith.constant dense<0.000000e+00> : vector<8xf32>
    %107 = vector.multi_reduction <add>, %106, %cst_47 [1] : vector<8x128xf32> to vector<8xf32>
    %108 = vector.shape_cast %107 : vector<8xf32> to vector<8x1xf32>
    %cst_48 = arith.constant 3.125000e-02 : f32
    %109 = vector.broadcast %cst_48 : f32 to vector<8x1xf32>
    %110 = arith.mulf %108, %109 : vector<8x1xf32>
    %111 = arith.mulf %105, %105 : vector<8x1xf32>
    %112 = arith.subf %110, %111 : vector<8x1xf32>
    %cst_49 = arith.constant 0.000000e+00 : f32
    %113 = vector.broadcast %cst_49 : f32 to vector<8x1xf32>
    %114 = arith.maximumf %112, %113 : vector<8x1xf32>
    %115 = vector.broadcast %105 : vector<8x1xf32> to vector<8x128xf32>
    %116 = arith.subf %101, %115 : vector<8x128xf32>
    %cst_50 = arith.constant 9.99999974E-6 : f32
    %117 = vector.broadcast %cst_50 : f32 to vector<8x1xf32>
    %118 = arith.addf %114, %117 : vector<8x1xf32>
    %119 = math.rsqrt %118 : vector<8x1xf32>
    %120 = vector.broadcast %119 : vector<8x1xf32> to vector<8x128xf32>
    %121 = arith.mulf %116, %120 : vector<8x128xf32>
    %122 = vector.broadcast %7 : vector<1x128xf32> to vector<8x128xf32>
    %123 = arith.mulf %121, %122 : vector<8x128xf32>
    %124 = vector.broadcast %8 : vector<1x128xf32> to vector<8x128xf32>
    %125 = arith.addf %123, %124 : vector<8x128xf32>
    %cst_51 = arith.constant 0.000000e+00 : f32
    %126 = vector.broadcast %cst_51 : f32 to vector<8x128xf32>
    %127 = arith.maximumf %125, %126 : vector<8x128xf32>
    %c0_52 = arith.constant 0 : index
    %c0_53 = arith.constant 0 : index
    %128 = vector.load %arg12[%c0_52, %c0_53] : memref<8x256xf32, #tpu.memory_space<vmem>>, vector<8x128xf32>
    tpu.vector_store %arg12[%c0_52, %c0_53], %127 {strides = array<i32>} : memref<8x256xf32, #tpu.memory_space<vmem>>, vector<8x128xf32>,
    %c0_54 = arith.constant 0 : index
    %c0_55 = arith.constant 0 : index
    %129 = vector.load %arg12[%c0_54, %c0_55] : memref<8x256xf32, #tpu.memory_space<vmem>>, vector<8x256xf32>
    %cst_56 = arith.constant dense<0.000000e+00> : vector<8x128xf32>
    %130 = tpu.matmul %129, %13, %cst_56 {dimension_numbers = #tpu.dot_dimension_numbers<[1], [0], [0], [1], [0, 0, 1, 1], [], []>} : vector<8x256xf32>, vector<256x128xf32>, vector<8x128xf32> -> vector<8x128xf32>
    %cst_57 = arith.constant dense<0.000000e+00> : vector<8xf32>
    %131 = vector.multi_reduction <add>, %130, %cst_57 [1] : vector<8x128xf32> to vector<8xf32>
    %132 = vector.shape_cast %131 : vector<8xf32> to vector<8x1xf32>
    %cst_58 = arith.constant 3.125000e-02 : f32
    %133 = vector.broadcast %cst_58 : f32 to vector<8x1xf32>
    %134 = arith.mulf %132, %133 : vector<8x1xf32>
    %135 = arith.mulf %130, %130 : vector<8x128xf32>
    %cst_59 = arith.constant dense<0.000000e+00> : vector<8xf32>
    %136 = vector.multi_reduction <add>, %135, %cst_59 [1] : vector<8x128xf32> to vector<8xf32>
    %137 = vector.shape_cast %136 : vector<8xf32> to vector<8x1xf32>
    %cst_60 = arith.constant 3.125000e-02 : f32
    %138 = vector.broadcast %cst_60 : f32 to vector<8x1xf32>
    %139 = arith.mulf %137, %138 : vector<8x1xf32>
    %140 = arith.mulf %134, %134 : vector<8x1xf32>
    %141 = arith.subf %139, %140 : vector<8x1xf32>
    %cst_61 = arith.constant 0.000000e+00 : f32
    %142 = vector.broadcast %cst_61 : f32 to vector<8x1xf32>
    %143 = arith.maximumf %141, %142 : vector<8x1xf32>
    %144 = vector.broadcast %134 : vector<8x1xf32> to vector<8x128xf32>
    %145 = arith.subf %130, %144 : vector<8x128xf32>
    %cst_62 = arith.constant 9.99999974E-6 : f32
    %146 = vector.broadcast %cst_62 : f32 to vector<8x1xf32>
    %147 = arith.addf %143, %146 : vector<8x1xf32>
    %148 = math.rsqrt %147 : vector<8x1xf32>
    %149 = vector.broadcast %148 : vector<8x1xf32> to vector<8x128xf32>
    %150 = arith.mulf %145, %149 : vector<8x128xf32>
    %151 = vector.broadcast %9 : vector<1x128xf32> to vector<8x128xf32>
    %152 = arith.mulf %150, %151 : vector<8x128xf32>
    %153 = vector.broadcast %10 : vector<1x128xf32> to vector<8x128xf32>
    %154 = arith.addf %152, %153 : vector<8x128xf32>
    %cst_63 = arith.constant 0.000000e+00 : f32
    %155 = vector.broadcast %cst_63 : f32 to vector<8x128xf32>
    %156 = arith.maximumf %154, %155 : vector<8x128xf32>
    %c0_64 = arith.constant 0 : index
    %c128_65 = arith.constant 128 : index
    %157 = vector.load %arg11[%c0_64, %c128_65] : memref<8x768xf32, #tpu.memory_space<vmem>>, vector<8x128xf32>
    tpu.vector_store %arg11[%c0_64, %c128_65], %156 {strides = array<i32>} : memref<8x768xf32, #tpu.memory_space<vmem>>, vector<8x128xf32>,
    %158 = vector.extract_strided_slice %0 {offsets = [0, 6], sizes = [8, 1], strides = [1, 1]} : vector<8x14xf32> to vector<8x1xf32>
    %159 = arith.subf %1, %158 : vector<8x1xf32>
    %160 = vector.extract_strided_slice %0 {offsets = [0, 7], sizes = [8, 1], strides = [1, 1]} : vector<8x14xf32> to vector<8x1xf32>
    %161 = arith.subf %2, %160 : vector<8x1xf32>
    %162 = vector.broadcast %159 : vector<8x1xf32> to vector<8x128xf32>
    %163 = vector.broadcast %3 : vector<1x128xf32> to vector<8x128xf32>
    %164 = arith.mulf %162, %163 : vector<8x128xf32>
    %165 = vector.broadcast %161 : vector<8x1xf32> to vector<8x128xf32>
    %166 = vector.broadcast %4 : vector<1x128xf32> to vector<8x128xf32>
    %167 = arith.mulf %165, %166 : vector<8x128xf32>
    %168 = arith.addf %164, %167 : vector<8x128xf32>
    %169 = vector.broadcast %5 : vector<1x128xf32> to vector<8x128xf32>
    %170 = arith.addf %168, %169 : vector<8x128xf32>
    %cst_66 = arith.constant 0.000000e+00 : f32
    %171 = vector.broadcast %cst_66 : f32 to vector<8x128xf32>
    %172 = arith.maximumf %170, %171 : vector<8x128xf32>
    %cst_67 = arith.constant dense<0.000000e+00> : vector<8x128xf32>
    %173 = tpu.matmul %172, %6, %cst_67 {dimension_numbers = #tpu.dot_dimension_numbers<[1], [0], [0], [1], [0, 0, 1, 1], [], []>} : vector<8x128xf32>, vector<128x128xf32>, vector<8x128xf32> -> vector<8x128xf32>
    %cst_68 = arith.constant dense<0.000000e+00> : vector<8xf32>
    %174 = vector.multi_reduction <add>, %173, %cst_68 [1] : vector<8x128xf32> to vector<8xf32>
    %175 = vector.shape_cast %174 : vector<8xf32> to vector<8x1xf32>
    %cst_69 = arith.constant 3.125000e-02 : f32
    %176 = vector.broadcast %cst_69 : f32 to vector<8x1xf32>
    %177 = arith.mulf %175, %176 : vector<8x1xf32>
    %178 = arith.mulf %173, %173 : vector<8x128xf32>
    %cst_70 = arith.constant dense<0.000000e+00> : vector<8xf32>
    %179 = vector.multi_reduction <add>, %178, %cst_70 [1] : vector<8x128xf32> to vector<8xf32>
    %180 = vector.shape_cast %179 : vector<8xf32> to vector<8x1xf32>
    %cst_71 = arith.constant 3.125000e-02 : f32
    %181 = vector.broadcast %cst_71 : f32 to vector<8x1xf32>
    %182 = arith.mulf %180, %181 : vector<8x1xf32>
    %183 = arith.mulf %177, %177 : vector<8x1xf32>
    %184 = arith.subf %182, %183 : vector<8x1xf32>
    %cst_72 = arith.constant 0.000000e+00 : f32
    %185 = vector.broadcast %cst_72 : f32 to vector<8x1xf32>
    %186 = arith.maximumf %184, %185 : vector<8x1xf32>
    %187 = vector.broadcast %177 : vector<8x1xf32> to vector<8x128xf32>
    %188 = arith.subf %173, %187 : vector<8x128xf32>
    %cst_73 = arith.constant 9.99999974E-6 : f32
    %189 = vector.broadcast %cst_73 : f32 to vector<8x1xf32>
    %190 = arith.addf %186, %189 : vector<8x1xf32>
    %191 = math.rsqrt %190 : vector<8x1xf32>
    %192 = vector.broadcast %191 : vector<8x1xf32> to vector<8x128xf32>
    %193 = arith.mulf %188, %192 : vector<8x128xf32>
    %194 = vector.broadcast %7 : vector<1x128xf32> to vector<8x128xf32>
    %195 = arith.mulf %193, %194 : vector<8x128xf32>
    %196 = vector.broadcast %8 : vector<1x128xf32> to vector<8x128xf32>
    %197 = arith.addf %195, %196 : vector<8x128xf32>
    %cst_74 = arith.constant 0.000000e+00 : f32
    %198 = vector.broadcast %cst_74 : f32 to vector<8x128xf32>
    %199 = arith.maximumf %197, %198 : vector<8x128xf32>
    %c0_75 = arith.constant 0 : index
    %c0_76 = arith.constant 0 : index
    %200 = vector.load %arg12[%c0_75, %c0_76] : memref<8x256xf32, #tpu.memory_space<vmem>>, vector<8x128xf32>
    tpu.vector_store %arg12[%c0_75, %c0_76], %199 {strides = array<i32>} : memref<8x256xf32, #tpu.memory_space<vmem>>, vector<8x128xf32>,
    %c0_77 = arith.constant 0 : index
    %c0_78 = arith.constant 0 : index
    %201 = vector.load %arg12[%c0_77, %c0_78] : memref<8x256xf32, #tpu.memory_space<vmem>>, vector<8x256xf32>
    %cst_79 = arith.constant dense<0.000000e+00> : vector<8x128xf32>
    %202 = tpu.matmul %201, %13, %cst_79 {dimension_numbers = #tpu.dot_dimension_numbers<[1], [0], [0], [1], [0, 0, 1, 1], [], []>} : vector<8x256xf32>, vector<256x128xf32>, vector<8x128xf32> -> vector<8x128xf32>
    %cst_80 = arith.constant dense<0.000000e+00> : vector<8xf32>
    %203 = vector.multi_reduction <add>, %202, %cst_80 [1] : vector<8x128xf32> to vector<8xf32>
    %204 = vector.shape_cast %203 : vector<8xf32> to vector<8x1xf32>
    %cst_81 = arith.constant 3.125000e-02 : f32
    %205 = vector.broadcast %cst_81 : f32 to vector<8x1xf32>
    %206 = arith.mulf %204, %205 : vector<8x1xf32>
    %207 = arith.mulf %202, %202 : vector<8x128xf32>
    %cst_82 = arith.constant dense<0.000000e+00> : vector<8xf32>
    %208 = vector.multi_reduction <add>, %207, %cst_82 [1] : vector<8x128xf32> to vector<8xf32>
    %209 = vector.shape_cast %208 : vector<8xf32> to vector<8x1xf32>
    %cst_83 = arith.constant 3.125000e-02 : f32
    %210 = vector.broadcast %cst_83 : f32 to vector<8x1xf32>
    %211 = arith.mulf %209, %210 : vector<8x1xf32>
    %212 = arith.mulf %206, %206 : vector<8x1xf32>
    %213 = arith.subf %211, %212 : vector<8x1xf32>
    %cst_84 = arith.constant 0.000000e+00 : f32
    %214 = vector.broadcast %cst_84 : f32 to vector<8x1xf32>
    %215 = arith.maximumf %213, %214 : vector<8x1xf32>
    %216 = vector.broadcast %206 : vector<8x1xf32> to vector<8x128xf32>
    %217 = arith.subf %202, %216 : vector<8x128xf32>
    %cst_85 = arith.constant 9.99999974E-6 : f32
    %218 = vector.broadcast %cst_85 : f32 to vector<8x1xf32>
    %219 = arith.addf %215, %218 : vector<8x1xf32>
    %220 = math.rsqrt %219 : vector<8x1xf32>
    %221 = vector.broadcast %220 : vector<8x1xf32> to vector<8x128xf32>
    %222 = arith.mulf %217, %221 : vector<8x128xf32>
    %223 = vector.broadcast %9 : vector<1x128xf32> to vector<8x128xf32>
    %224 = arith.mulf %222, %223 : vector<8x128xf32>
    %225 = vector.broadcast %10 : vector<1x128xf32> to vector<8x128xf32>
    %226 = arith.addf %224, %225 : vector<8x128xf32>
    %cst_86 = arith.constant 0.000000e+00 : f32
    %227 = vector.broadcast %cst_86 : f32 to vector<8x128xf32>
    %228 = arith.maximumf %226, %227 : vector<8x128xf32>
    %c0_87 = arith.constant 0 : index
    %c256 = arith.constant 256 : index
    %229 = vector.load %arg11[%c0_87, %c256] : memref<8x768xf32, #tpu.memory_space<vmem>>, vector<8x128xf32>
    tpu.vector_store %arg11[%c0_87, %c256], %228 {strides = array<i32>} : memref<8x768xf32, #tpu.memory_space<vmem>>, vector<8x128xf32>,
    %230 = vector.extract_strided_slice %0 {offsets = [0, 8], sizes = [8, 1], strides = [1, 1]} : vector<8x14xf32> to vector<8x1xf32>
    %231 = arith.subf %1, %230 : vector<8x1xf32>
    %232 = vector.extract_strided_slice %0 {offsets = [0, 9], sizes = [8, 1], strides = [1, 1]} : vector<8x14xf32> to vector<8x1xf32>
    %233 = arith.subf %2, %232 : vector<8x1xf32>
    %234 = vector.broadcast %231 : vector<8x1xf32> to vector<8x128xf32>
    %235 = vector.broadcast %3 : vector<1x128xf32> to vector<8x128xf32>
    %236 = arith.mulf %234, %235 : vector<8x128xf32>
    %237 = vector.broadcast %233 : vector<8x1xf32> to vector<8x128xf32>
    %238 = vector.broadcast %4 : vector<1x128xf32> to vector<8x128xf32>
    %239 = arith.mulf %237, %238 : vector<8x128xf32>
    %240 = arith.addf %236, %239 : vector<8x128xf32>
    %241 = vector.broadcast %5 : vector<1x128xf32> to vector<8x128xf32>
    %242 = arith.addf %240, %241 : vector<8x128xf32>
    %cst_88 = arith.constant 0.000000e+00 : f32
    %243 = vector.broadcast %cst_88 : f32 to vector<8x128xf32>
    %244 = arith.maximumf %242, %243 : vector<8x128xf32>
    %cst_89 = arith.constant dense<0.000000e+00> : vector<8x128xf32>
    %245 = tpu.matmul %244, %6, %cst_89 {dimension_numbers = #tpu.dot_dimension_numbers<[1], [0], [0], [1], [0, 0, 1, 1], [], []>} : vector<8x128xf32>, vector<128x128xf32>, vector<8x128xf32> -> vector<8x128xf32>
    %cst_90 = arith.constant dense<0.000000e+00> : vector<8xf32>
    %246 = vector.multi_reduction <add>, %245, %cst_90 [1] : vector<8x128xf32> to vector<8xf32>
    %247 = vector.shape_cast %246 : vector<8xf32> to vector<8x1xf32>
    %cst_91 = arith.constant 3.125000e-02 : f32
    %248 = vector.broadcast %cst_91 : f32 to vector<8x1xf32>
    %249 = arith.mulf %247, %248 : vector<8x1xf32>
    %250 = arith.mulf %245, %245 : vector<8x128xf32>
    %cst_92 = arith.constant dense<0.000000e+00> : vector<8xf32>
    %251 = vector.multi_reduction <add>, %250, %cst_92 [1] : vector<8x128xf32> to vector<8xf32>
    %252 = vector.shape_cast %251 : vector<8xf32> to vector<8x1xf32>
    %cst_93 = arith.constant 3.125000e-02 : f32
    %253 = vector.broadcast %cst_93 : f32 to vector<8x1xf32>
    %254 = arith.mulf %252, %253 : vector<8x1xf32>
    %255 = arith.mulf %249, %249 : vector<8x1xf32>
    %256 = arith.subf %254, %255 : vector<8x1xf32>
    %cst_94 = arith.constant 0.000000e+00 : f32
    %257 = vector.broadcast %cst_94 : f32 to vector<8x1xf32>
    %258 = arith.maximumf %256, %257 : vector<8x1xf32>
    %259 = vector.broadcast %249 : vector<8x1xf32> to vector<8x128xf32>
    %260 = arith.subf %245, %259 : vector<8x128xf32>
    %cst_95 = arith.constant 9.99999974E-6 : f32
    %261 = vector.broadcast %cst_95 : f32 to vector<8x1xf32>
    %262 = arith.addf %258, %261 : vector<8x1xf32>
    %263 = math.rsqrt %262 : vector<8x1xf32>
    %264 = vector.broadcast %263 : vector<8x1xf32> to vector<8x128xf32>
    %265 = arith.mulf %260, %264 : vector<8x128xf32>
    %266 = vector.broadcast %7 : vector<1x128xf32> to vector<8x128xf32>
    %267 = arith.mulf %265, %266 : vector<8x128xf32>
    %268 = vector.broadcast %8 : vector<1x128xf32> to vector<8x128xf32>
    %269 = arith.addf %267, %268 : vector<8x128xf32>
    %cst_96 = arith.constant 0.000000e+00 : f32
    %270 = vector.broadcast %cst_96 : f32 to vector<8x128xf32>
    %271 = arith.maximumf %269, %270 : vector<8x128xf32>
    %c0_97 = arith.constant 0 : index
    %c0_98 = arith.constant 0 : index
    %272 = vector.load %arg12[%c0_97, %c0_98] : memref<8x256xf32, #tpu.memory_space<vmem>>, vector<8x128xf32>
    tpu.vector_store %arg12[%c0_97, %c0_98], %271 {strides = array<i32>} : memref<8x256xf32, #tpu.memory_space<vmem>>, vector<8x128xf32>,
    %c0_99 = arith.constant 0 : index
    %c0_100 = arith.constant 0 : index
    %273 = vector.load %arg12[%c0_99, %c0_100] : memref<8x256xf32, #tpu.memory_space<vmem>>, vector<8x256xf32>
    %cst_101 = arith.constant dense<0.000000e+00> : vector<8x128xf32>
    %274 = tpu.matmul %273, %13, %cst_101 {dimension_numbers = #tpu.dot_dimension_numbers<[1], [0], [0], [1], [0, 0, 1, 1], [], []>} : vector<8x256xf32>, vector<256x128xf32>, vector<8x128xf32> -> vector<8x128xf32>
    %cst_102 = arith.constant dense<0.000000e+00> : vector<8xf32>
    %275 = vector.multi_reduction <add>, %274, %cst_102 [1] : vector<8x128xf32> to vector<8xf32>
    %276 = vector.shape_cast %275 : vector<8xf32> to vector<8x1xf32>
    %cst_103 = arith.constant 3.125000e-02 : f32
    %277 = vector.broadcast %cst_103 : f32 to vector<8x1xf32>
    %278 = arith.mulf %276, %277 : vector<8x1xf32>
    %279 = arith.mulf %274, %274 : vector<8x128xf32>
    %cst_104 = arith.constant dense<0.000000e+00> : vector<8xf32>
    %280 = vector.multi_reduction <add>, %279, %cst_104 [1] : vector<8x128xf32> to vector<8xf32>
    %281 = vector.shape_cast %280 : vector<8xf32> to vector<8x1xf32>
    %cst_105 = arith.constant 3.125000e-02 : f32
    %282 = vector.broadcast %cst_105 : f32 to vector<8x1xf32>
    %283 = arith.mulf %281, %282 : vector<8x1xf32>
    %284 = arith.mulf %278, %278 : vector<8x1xf32>
    %285 = arith.subf %283, %284 : vector<8x1xf32>
    %cst_106 = arith.constant 0.000000e+00 : f32
    %286 = vector.broadcast %cst_106 : f32 to vector<8x1xf32>
    %287 = arith.maximumf %285, %286 : vector<8x1xf32>
    %288 = vector.broadcast %278 : vector<8x1xf32> to vector<8x128xf32>
    %289 = arith.subf %274, %288 : vector<8x128xf32>
    %cst_107 = arith.constant 9.99999974E-6 : f32
    %290 = vector.broadcast %cst_107 : f32 to vector<8x1xf32>
    %291 = arith.addf %287, %290 : vector<8x1xf32>
    %292 = math.rsqrt %291 : vector<8x1xf32>
    %293 = vector.broadcast %292 : vector<8x1xf32> to vector<8x128xf32>
    %294 = arith.mulf %289, %293 : vector<8x128xf32>
    %295 = vector.broadcast %9 : vector<1x128xf32> to vector<8x128xf32>
    %296 = arith.mulf %294, %295 : vector<8x128xf32>
    %297 = vector.broadcast %10 : vector<1x128xf32> to vector<8x128xf32>
    %298 = arith.addf %296, %297 : vector<8x128xf32>
    %cst_108 = arith.constant 0.000000e+00 : f32
    %299 = vector.broadcast %cst_108 : f32 to vector<8x128xf32>
    %300 = arith.maximumf %298, %299 : vector<8x128xf32>
    %c0_109 = arith.constant 0 : index
    %c384 = arith.constant 384 : index
    %301 = vector.load %arg11[%c0_109, %c384] : memref<8x768xf32, #tpu.memory_space<vmem>>, vector<8x128xf32>
    tpu.vector_store %arg11[%c0_109, %c384], %300 {strides = array<i32>} : memref<8x768xf32, #tpu.memory_space<vmem>>, vector<8x128xf32>,
    %302 = vector.extract_strided_slice %0 {offsets = [0, 10], sizes = [8, 1], strides = [1, 1]} : vector<8x14xf32> to vector<8x1xf32>
    %303 = arith.subf %1, %302 : vector<8x1xf32>
    %304 = vector.extract_strided_slice %0 {offsets = [0, 11], sizes = [8, 1], strides = [1, 1]} : vector<8x14xf32> to vector<8x1xf32>
    %305 = arith.subf %2, %304 : vector<8x1xf32>
    %306 = vector.broadcast %303 : vector<8x1xf32> to vector<8x128xf32>
    %307 = vector.broadcast %3 : vector<1x128xf32> to vector<8x128xf32>
    %308 = arith.mulf %306, %307 : vector<8x128xf32>
    %309 = vector.broadcast %305 : vector<8x1xf32> to vector<8x128xf32>
    %310 = vector.broadcast %4 : vector<1x128xf32> to vector<8x128xf32>
    %311 = arith.mulf %309, %310 : vector<8x128xf32>
    %312 = arith.addf %308, %311 : vector<8x128xf32>
    %313 = vector.broadcast %5 : vector<1x128xf32> to vector<8x128xf32>
    %314 = arith.addf %312, %313 : vector<8x128xf32>
    %cst_110 = arith.constant 0.000000e+00 : f32
    %315 = vector.broadcast %cst_110 : f32 to vector<8x128xf32>
    %316 = arith.maximumf %314, %315 : vector<8x128xf32>
    %cst_111 = arith.constant dense<0.000000e+00> : vector<8x128xf32>
    %317 = tpu.matmul %316, %6, %cst_111 {dimension_numbers = #tpu.dot_dimension_numbers<[1], [0], [0], [1], [0, 0, 1, 1], [], []>} : vector<8x128xf32>, vector<128x128xf32>, vector<8x128xf32> -> vector<8x128xf32>
    %cst_112 = arith.constant dense<0.000000e+00> : vector<8xf32>
    %318 = vector.multi_reduction <add>, %317, %cst_112 [1] : vector<8x128xf32> to vector<8xf32>
    %319 = vector.shape_cast %318 : vector<8xf32> to vector<8x1xf32>
    %cst_113 = arith.constant 3.125000e-02 : f32
    %320 = vector.broadcast %cst_113 : f32 to vector<8x1xf32>
    %321 = arith.mulf %319, %320 : vector<8x1xf32>
    %322 = arith.mulf %317, %317 : vector<8x128xf32>
    %cst_114 = arith.constant dense<0.000000e+00> : vector<8xf32>
    %323 = vector.multi_reduction <add>, %322, %cst_114 [1] : vector<8x128xf32> to vector<8xf32>
    %324 = vector.shape_cast %323 : vector<8xf32> to vector<8x1xf32>
    %cst_115 = arith.constant 3.125000e-02 : f32
    %325 = vector.broadcast %cst_115 : f32 to vector<8x1xf32>
    %326 = arith.mulf %324, %325 : vector<8x1xf32>
    %327 = arith.mulf %321, %321 : vector<8x1xf32>
    %328 = arith.subf %326, %327 : vector<8x1xf32>
    %cst_116 = arith.constant 0.000000e+00 : f32
    %329 = vector.broadcast %cst_116 : f32 to vector<8x1xf32>
    %330 = arith.maximumf %328, %329 : vector<8x1xf32>
    %331 = vector.broadcast %321 : vector<8x1xf32> to vector<8x128xf32>
    %332 = arith.subf %317, %331 : vector<8x128xf32>
    %cst_117 = arith.constant 9.99999974E-6 : f32
    %333 = vector.broadcast %cst_117 : f32 to vector<8x1xf32>
    %334 = arith.addf %330, %333 : vector<8x1xf32>
    %335 = math.rsqrt %334 : vector<8x1xf32>
    %336 = vector.broadcast %335 : vector<8x1xf32> to vector<8x128xf32>
    %337 = arith.mulf %332, %336 : vector<8x128xf32>
    %338 = vector.broadcast %7 : vector<1x128xf32> to vector<8x128xf32>
    %339 = arith.mulf %337, %338 : vector<8x128xf32>
    %340 = vector.broadcast %8 : vector<1x128xf32> to vector<8x128xf32>
    %341 = arith.addf %339, %340 : vector<8x128xf32>
    %cst_118 = arith.constant 0.000000e+00 : f32
    %342 = vector.broadcast %cst_118 : f32 to vector<8x128xf32>
    %343 = arith.maximumf %341, %342 : vector<8x128xf32>
    %c0_119 = arith.constant 0 : index
    %c0_120 = arith.constant 0 : index
    %344 = vector.load %arg12[%c0_119, %c0_120] : memref<8x256xf32, #tpu.memory_space<vmem>>, vector<8x128xf32>
    tpu.vector_store %arg12[%c0_119, %c0_120], %343 {strides = array<i32>} : memref<8x256xf32, #tpu.memory_space<vmem>>, vector<8x128xf32>,
    %c0_121 = arith.constant 0 : index
    %c0_122 = arith.constant 0 : index
    %345 = vector.load %arg12[%c0_121, %c0_122] : memref<8x256xf32, #tpu.memory_space<vmem>>, vector<8x256xf32>
    %cst_123 = arith.constant dense<0.000000e+00> : vector<8x128xf32>
    %346 = tpu.matmul %345, %13, %cst_123 {dimension_numbers = #tpu.dot_dimension_numbers<[1], [0], [0], [1], [0, 0, 1, 1], [], []>} : vector<8x256xf32>, vector<256x128xf32>, vector<8x128xf32> -> vector<8x128xf32>
    %cst_124 = arith.constant dense<0.000000e+00> : vector<8xf32>
    %347 = vector.multi_reduction <add>, %346, %cst_124 [1] : vector<8x128xf32> to vector<8xf32>
    %348 = vector.shape_cast %347 : vector<8xf32> to vector<8x1xf32>
    %cst_125 = arith.constant 3.125000e-02 : f32
    %349 = vector.broadcast %cst_125 : f32 to vector<8x1xf32>
    %350 = arith.mulf %348, %349 : vector<8x1xf32>
    %351 = arith.mulf %346, %346 : vector<8x128xf32>
    %cst_126 = arith.constant dense<0.000000e+00> : vector<8xf32>
    %352 = vector.multi_reduction <add>, %351, %cst_126 [1] : vector<8x128xf32> to vector<8xf32>
    %353 = vector.shape_cast %352 : vector<8xf32> to vector<8x1xf32>
    %cst_127 = arith.constant 3.125000e-02 : f32
    %354 = vector.broadcast %cst_127 : f32 to vector<8x1xf32>
    %355 = arith.mulf %353, %354 : vector<8x1xf32>
    %356 = arith.mulf %350, %350 : vector<8x1xf32>
    %357 = arith.subf %355, %356 : vector<8x1xf32>
    %cst_128 = arith.constant 0.000000e+00 : f32
    %358 = vector.broadcast %cst_128 : f32 to vector<8x1xf32>
    %359 = arith.maximumf %357, %358 : vector<8x1xf32>
    %360 = vector.broadcast %350 : vector<8x1xf32> to vector<8x128xf32>
    %361 = arith.subf %346, %360 : vector<8x128xf32>
    %cst_129 = arith.constant 9.99999974E-6 : f32
    %362 = vector.broadcast %cst_129 : f32 to vector<8x1xf32>
    %363 = arith.addf %359, %362 : vector<8x1xf32>
    %364 = math.rsqrt %363 : vector<8x1xf32>
    %365 = vector.broadcast %364 : vector<8x1xf32> to vector<8x128xf32>
    %366 = arith.mulf %361, %365 : vector<8x128xf32>
    %367 = vector.broadcast %9 : vector<1x128xf32> to vector<8x128xf32>
    %368 = arith.mulf %366, %367 : vector<8x128xf32>
    %369 = vector.broadcast %10 : vector<1x128xf32> to vector<8x128xf32>
    %370 = arith.addf %368, %369 : vector<8x128xf32>
    %cst_130 = arith.constant 0.000000e+00 : f32
    %371 = vector.broadcast %cst_130 : f32 to vector<8x128xf32>
    %372 = arith.maximumf %370, %371 : vector<8x128xf32>
    %c0_131 = arith.constant 0 : index
    %c512 = arith.constant 512 : index
    %373 = vector.load %arg11[%c0_131, %c512] : memref<8x768xf32, #tpu.memory_space<vmem>>, vector<8x128xf32>
    tpu.vector_store %arg11[%c0_131, %c512], %372 {strides = array<i32>} : memref<8x768xf32, #tpu.memory_space<vmem>>, vector<8x128xf32>,
    %374 = vector.extract_strided_slice %0 {offsets = [0, 12], sizes = [8, 1], strides = [1, 1]} : vector<8x14xf32> to vector<8x1xf32>
    %375 = arith.subf %1, %374 : vector<8x1xf32>
    %376 = vector.extract_strided_slice %0 {offsets = [0, 13], sizes = [8, 1], strides = [1, 1]} : vector<8x14xf32> to vector<8x1xf32>
    %377 = arith.subf %2, %376 : vector<8x1xf32>
    %378 = vector.broadcast %375 : vector<8x1xf32> to vector<8x128xf32>
    %379 = vector.broadcast %3 : vector<1x128xf32> to vector<8x128xf32>
    %380 = arith.mulf %378, %379 : vector<8x128xf32>
    %381 = vector.broadcast %377 : vector<8x1xf32> to vector<8x128xf32>
    %382 = vector.broadcast %4 : vector<1x128xf32> to vector<8x128xf32>
    %383 = arith.mulf %381, %382 : vector<8x128xf32>
    %384 = arith.addf %380, %383 : vector<8x128xf32>
    %385 = vector.broadcast %5 : vector<1x128xf32> to vector<8x128xf32>
    %386 = arith.addf %384, %385 : vector<8x128xf32>
    %cst_132 = arith.constant 0.000000e+00 : f32
    %387 = vector.broadcast %cst_132 : f32 to vector<8x128xf32>
    %388 = arith.maximumf %386, %387 : vector<8x128xf32>
    %cst_133 = arith.constant dense<0.000000e+00> : vector<8x128xf32>
    %389 = tpu.matmul %388, %6, %cst_133 {dimension_numbers = #tpu.dot_dimension_numbers<[1], [0], [0], [1], [0, 0, 1, 1], [], []>} : vector<8x128xf32>, vector<128x128xf32>, vector<8x128xf32> -> vector<8x128xf32>
    %cst_134 = arith.constant dense<0.000000e+00> : vector<8xf32>
    %390 = vector.multi_reduction <add>, %389, %cst_134 [1] : vector<8x128xf32> to vector<8xf32>
    %391 = vector.shape_cast %390 : vector<8xf32> to vector<8x1xf32>
    %cst_135 = arith.constant 3.125000e-02 : f32
    %392 = vector.broadcast %cst_135 : f32 to vector<8x1xf32>
    %393 = arith.mulf %391, %392 : vector<8x1xf32>
    %394 = arith.mulf %389, %389 : vector<8x128xf32>
    %cst_136 = arith.constant dense<0.000000e+00> : vector<8xf32>
    %395 = vector.multi_reduction <add>, %394, %cst_136 [1] : vector<8x128xf32> to vector<8xf32>
    %396 = vector.shape_cast %395 : vector<8xf32> to vector<8x1xf32>
    %cst_137 = arith.constant 3.125000e-02 : f32
    %397 = vector.broadcast %cst_137 : f32 to vector<8x1xf32>
    %398 = arith.mulf %396, %397 : vector<8x1xf32>
    %399 = arith.mulf %393, %393 : vector<8x1xf32>
    %400 = arith.subf %398, %399 : vector<8x1xf32>
    %cst_138 = arith.constant 0.000000e+00 : f32
    %401 = vector.broadcast %cst_138 : f32 to vector<8x1xf32>
    %402 = arith.maximumf %400, %401 : vector<8x1xf32>
    %403 = vector.broadcast %393 : vector<8x1xf32> to vector<8x128xf32>
    %404 = arith.subf %389, %403 : vector<8x128xf32>
    %cst_139 = arith.constant 9.99999974E-6 : f32
    %405 = vector.broadcast %cst_139 : f32 to vector<8x1xf32>
    %406 = arith.addf %402, %405 : vector<8x1xf32>
    %407 = math.rsqrt %406 : vector<8x1xf32>
    %408 = vector.broadcast %407 : vector<8x1xf32> to vector<8x128xf32>
    %409 = arith.mulf %404, %408 : vector<8x128xf32>
    %410 = vector.broadcast %7 : vector<1x128xf32> to vector<8x128xf32>
    %411 = arith.mulf %409, %410 : vector<8x128xf32>
    %412 = vector.broadcast %8 : vector<1x128xf32> to vector<8x128xf32>
    %413 = arith.addf %411, %412 : vector<8x128xf32>
    %cst_140 = arith.constant 0.000000e+00 : f32
    %414 = vector.broadcast %cst_140 : f32 to vector<8x128xf32>
    %415 = arith.maximumf %413, %414 : vector<8x128xf32>
    %c0_141 = arith.constant 0 : index
    %c0_142 = arith.constant 0 : index
    %416 = vector.load %arg12[%c0_141, %c0_142] : memref<8x256xf32, #tpu.memory_space<vmem>>, vector<8x128xf32>
    tpu.vector_store %arg12[%c0_141, %c0_142], %415 {strides = array<i32>} : memref<8x256xf32, #tpu.memory_space<vmem>>, vector<8x128xf32>,
    %c0_143 = arith.constant 0 : index
    %c0_144 = arith.constant 0 : index
    %417 = vector.load %arg12[%c0_143, %c0_144] : memref<8x256xf32, #tpu.memory_space<vmem>>, vector<8x256xf32>
    %cst_145 = arith.constant dense<0.000000e+00> : vector<8x128xf32>
    %418 = tpu.matmul %417, %13, %cst_145 {dimension_numbers = #tpu.dot_dimension_numbers<[1], [0], [0], [1], [0, 0, 1, 1], [], []>} : vector<8x256xf32>, vector<256x128xf32>, vector<8x128xf32> -> vector<8x128xf32>
    %cst_146 = arith.constant dense<0.000000e+00> : vector<8xf32>
    %419 = vector.multi_reduction <add>, %418, %cst_146 [1] : vector<8x128xf32> to vector<8xf32>
    %420 = vector.shape_cast %419 : vector<8xf32> to vector<8x1xf32>
    %cst_147 = arith.constant 3.125000e-02 : f32
    %421 = vector.broadcast %cst_147 : f32 to vector<8x1xf32>
    %422 = arith.mulf %420, %421 : vector<8x1xf32>
    %423 = arith.mulf %418, %418 : vector<8x128xf32>
    %cst_148 = arith.constant dense<0.000000e+00> : vector<8xf32>
    %424 = vector.multi_reduction <add>, %423, %cst_148 [1] : vector<8x128xf32> to vector<8xf32>
    %425 = vector.shape_cast %424 : vector<8xf32> to vector<8x1xf32>
    %cst_149 = arith.constant 3.125000e-02 : f32
    %426 = vector.broadcast %cst_149 : f32 to vector<8x1xf32>
    %427 = arith.mulf %425, %426 : vector<8x1xf32>
    %428 = arith.mulf %422, %422 : vector<8x1xf32>
    %429 = arith.subf %427, %428 : vector<8x1xf32>
    %cst_150 = arith.constant 0.000000e+00 : f32
    %430 = vector.broadcast %cst_150 : f32 to vector<8x1xf32>
    %431 = arith.maximumf %429, %430 : vector<8x1xf32>
    %432 = vector.broadcast %422 : vector<8x1xf32> to vector<8x128xf32>
    %433 = arith.subf %418, %432 : vector<8x128xf32>
    %cst_151 = arith.constant 9.99999974E-6 : f32
    %434 = vector.broadcast %cst_151 : f32 to vector<8x1xf32>
    %435 = arith.addf %431, %434 : vector<8x1xf32>
    %436 = math.rsqrt %435 : vector<8x1xf32>
    %437 = vector.broadcast %436 : vector<8x1xf32> to vector<8x128xf32>
    %438 = arith.mulf %433, %437 : vector<8x128xf32>
    %439 = vector.broadcast %9 : vector<1x128xf32> to vector<8x128xf32>
    %440 = arith.mulf %438, %439 : vector<8x128xf32>
    %441 = vector.broadcast %10 : vector<1x128xf32> to vector<8x128xf32>
    %442 = arith.addf %440, %441 : vector<8x128xf32>
    %cst_152 = arith.constant 0.000000e+00 : f32
    %443 = vector.broadcast %cst_152 : f32 to vector<8x128xf32>
    %444 = arith.maximumf %442, %443 : vector<8x128xf32>
    %c0_153 = arith.constant 0 : index
    %c640 = arith.constant 640 : index
    %445 = vector.load %arg11[%c0_153, %c640] : memref<8x768xf32, #tpu.memory_space<vmem>>, vector<8x128xf32>
    tpu.vector_store %arg11[%c0_153, %c640], %444 {strides = array<i32>} : memref<8x768xf32, #tpu.memory_space<vmem>>, vector<8x128xf32>,
    return
  }
  func.func @transform_0(%arg0: i32) -> (i32, i32) {
    %c0_i32 = arith.constant 0 : i32
    %c0_i32_0 = arith.constant 0 : i32
    return %arg0, %c0_i32 : i32, i32
  }
  func.func @transform_1(%arg0: i32) -> (i32, i32) {
    %c0_i32 = arith.constant 0 : i32
    %c0_i32_0 = arith.constant 0 : i32
    return %arg0, %c0_i32 : i32, i32
  }
  func.func @transform_2(%arg0: i32) -> (i32, i32) {
    %c0_i32 = arith.constant 0 : i32
    %c0_i32_0 = arith.constant 0 : i32
    %c0_i32_1 = arith.constant 0 : i32
    return %c0_i32, %c0_i32_0 : i32, i32
  }
  func.func @transform_3(%arg0: i32) -> (i32, i32) {
    %c0_i32 = arith.constant 0 : i32
    %c0_i32_0 = arith.constant 0 : i32
    %c0_i32_1 = arith.constant 0 : i32
    return %c0_i32, %c0_i32_0 : i32, i32
  }
  func.func @transform_4(%arg0: i32) -> (i32, i32) {
    %c0_i32 = arith.constant 0 : i32
    %c0_i32_0 = arith.constant 0 : i32
    %c0_i32_1 = arith.constant 0 : i32
    return %c0_i32, %c0_i32_0 : i32, i32
  }
  func.func @transform_5(%arg0: i32) -> (i32, i32) {
    %c0_i32 = arith.constant 0 : i32
    %c0_i32_0 = arith.constant 0 : i32
    %c0_i32_1 = arith.constant 0 : i32
    return %c0_i32, %c0_i32_0 : i32, i32
  }
  func.func @transform_6(%arg0: i32) -> (i32, i32) {
    %c0_i32 = arith.constant 0 : i32
    %c0_i32_0 = arith.constant 0 : i32
    %c0_i32_1 = arith.constant 0 : i32
    return %c0_i32, %c0_i32_0 : i32, i32
  }
  func.func @transform_7(%arg0: i32) -> (i32, i32) {
    %c0_i32 = arith.constant 0 : i32
    %c0_i32_0 = arith.constant 0 : i32
    %c0_i32_1 = arith.constant 0 : i32
    return %c0_i32, %c0_i32_0 : i32, i32
  }
  func.func @transform_8(%arg0: i32) -> (i32, i32) {
    %c0_i32 = arith.constant 0 : i32
    %c0_i32_0 = arith.constant 0 : i32
    %c0_i32_1 = arith.constant 0 : i32
    return %c0_i32, %c0_i32_0 : i32, i32
  }
  func.func @transform_9(%arg0: i32) -> (i32, i32) {
    %c0_i32 = arith.constant 0 : i32
    %c0_i32_0 = arith.constant 0 : i32
    %c0_i32_1 = arith.constant 0 : i32
    return %c0_i32, %c0_i32_0 : i32, i32
  }
  func.func @transform_10(%arg0: i32) -> (i32, i32) {
    %c0_i32 = arith.constant 0 : i32
    %c0_i32_0 = arith.constant 0 : i32
    return %arg0, %c0_i32 : i32, i32
  }
}

</mosaic_0001>

<llo_original>
// kernel: tpu_custom_call.1
$region0: #{tpu_custom_call.1}
  #allocation0 [shape = 'u32[]', space=smem, size = 0x4, offset = 0x4, fixed_abs, tag = 'smem constant byte address 0x4 - core index']
  #allocation1 [shape = 'u32[144,128]{1,0:T(1,128)}', space=vmem, size = 0x12000, scoped, tag = 'internal scratch']
  #allocation2 [shape = 'f32[8,256]{1,0:T(8,128)}', space=vmem, size = 0x2000, scoped, tag = 'scratch operand']
  %s0 = inlined_call_operand.hbm [shape: f32[8,14], index: 0, kind: input, shape index: {}]
  %s1 = inlined_call_operand.hbm [shape: f32[8,128], index: 1, kind: input, shape index: {}]
  %s2 = inlined_call_operand.vmem [shape: f32[2,128], index: 2, kind: input, shape index: {}]
  %s3 = inlined_call_operand.vmem [shape: f32[1,128], index: 3, kind: input, shape index: {}]
  %s4 = inlined_call_operand.hbm [shape: f32[128,128], index: 4, kind: input, shape index: {}]
  %s5 = inlined_call_operand.vmem [shape: f32[1,128], index: 5, kind: input, shape index: {}]
  %s6 = inlined_call_operand.vmem [shape: f32[1,128], index: 6, kind: input, shape index: {}]
  %s7 = inlined_call_operand.hbm [shape: f32[256,128], index: 7, kind: input, shape index: {}]
  %s8 = inlined_call_operand.vmem [shape: f32[1,128], index: 8, kind: input, shape index: {}]
  %s9 = inlined_call_operand.vmem [shape: f32[1,128], index: 9, kind: input, shape index: {}]
  %s10 = inlined_call_operand.hbm [shape: f32[8,768], index: 10, kind: output, shape index: {}]
  %s11 = sld [smem:[#allocation0]]
  $region66: #{tpu_custom_call.1} parent=0
    _
  %s13 = ssub.s32 1, %s11
  %s14 = scalar_select 0, %s13, %s11
  $region1: #{tpu_custom_call.1} parent=0
    #allocation3 [shape = 'u8[4096]{0}', space=vmem, size = 0x1000, scoped, tag = 'input window, operand 0, single buffered']
    #allocation4 [shape = 's32[1]{0}', space=sflag, size = 0x4, scoped, tag = 'scoped memory for tpu_custom_call.1']
    #allocation5 [shape = 's32[1]{0}', space=sflag, size = 0x4, scoped, tag = 'scoped memory for tpu_custom_call.1']
    #allocation6 [shape = 'u8[4096]{0}', space=vmem, size = 0x1000, scoped, tag = 'input window, operand 1, single buffered']
    #allocation7 [shape = 's32[1]{0}', space=sflag, size = 0x4, scoped, tag = 'scoped memory for tpu_custom_call.1']
    #allocation8 [shape = 'u8[65536]{0}', space=vmem, size = 0x10000, scoped, tag = 'input window, operand 4, single buffered']
    #allocation9 [shape = 'u8[131072]{0}', space=vmem, size = 0x20000, scoped, tag = 'input window, operand 7, single buffered']
    #allocation10 [shape = 's32[1]{0}', space=sflag, size = 0x4, scoped, tag = 'scoped memory for tpu_custom_call.1']
    #allocation11 [shape = 'u8[24576]{0}', space=vmem, size = 0x6000, scoped, tag = 'output window, operand 0, single buffered']
    %15 = vsyncpa [#allocation4], 0
    %16 = vsyncpa [#allocation7], 0
    %17 = vsyncpa [#allocation10], 0
    %18 = vsyncpa [#allocation5], 0
    // Predicated region
    $region2: #{tpu_custom_call.1} parent=1 // pred_check
      _
    $region3: #{tpu_custom_call.1} parent=1 // pred_check_branch
      %20 = sbr.rel (0) target = $region5
    $region4: #{tpu_custom_call.1} parent=1 // pred_region
      %s22 = ssub.s32 128, 128
      %23 = vsyncadd [#allocation4], %s22
      %s25 = sshll.u32 [#allocation3], 4
      %s26 = int_to_ptr.vmem [resolvable:$true] %s25
      %28 = dma.hbm_to_vmem [thread:$0]  %s0, 128, %s26, [#allocation4]
    $region5: #{tpu_custom_call.1} parent=1 // pred_fallthru
      _
    // Predicated region
    $region6: #{tpu_custom_call.1} parent=1 // pred_check
      _
    $region7: #{tpu_custom_call.1} parent=1 // pred_check_branch
      %30 = sbr.rel (0) target = $region9
    $region8: #{tpu_custom_call.1} parent=1 // pred_region
      %s32 = ssub.s32 128, 128
      %33 = vsyncadd [#allocation7], %s32
      %s35 = sshll.u32 [#allocation6], 4
      %s36 = int_to_ptr.vmem [resolvable:$true] %s35
      %38 = dma.hbm_to_vmem [thread:$0]  %s1, 128, %s36, [#allocation7]
    $region9: #{tpu_custom_call.1} parent=1 // pred_fallthru
      _
    // Predicated region
    $region10: #{tpu_custom_call.1} parent=1 // pred_check
      _
    $region11: #{tpu_custom_call.1} parent=1 // pred_check_branch
      %40 = sbr.rel (0) target = $region13
    $region12: #{tpu_custom_call.1} parent=1 // pred_region
      _
    $region13: #{tpu_custom_call.1} parent=1 // pred_fallthru
      _
    // Predicated region
    $region14: #{tpu_custom_call.1} parent=1 // pred_check
      _
    $region15: #{tpu_custom_call.1} parent=1 // pred_check_branch
      %42 = sbr.rel (0) target = $region17
    $region16: #{tpu_custom_call.1} parent=1 // pred_region
      _
    $region17: #{tpu_custom_call.1} parent=1 // pred_fallthru
      _
    // Predicated region
    $region18: #{tpu_custom_call.1} parent=1 // pred_check
      _
    $region19: #{tpu_custom_call.1} parent=1 // pred_check_branch
      %44 = sbr.rel (0) target = $region21
    $region20: #{tpu_custom_call.1} parent=1 // pred_region
      %s46 = ssub.s32 2048, 2048
      %47 = vsyncadd [#allocation7], %s46
      %s48 = sshll.u32 [#allocation8], 4
      %s49 = int_to_ptr.vmem [resolvable:$true] %s48
      %54 = dma.hbm_to_vmem [thread:$0]  %s4, 2048, %s49, [#allocation7], 128, 128, 8
    $region21: #{tpu_custom_call.1} parent=1 // pred_fallthru
      _
    // Predicated region
    $region22: #{tpu_custom_call.1} parent=1 // pred_check
      _
    $region23: #{tpu_custom_call.1} parent=1 // pred_check_branch
      %56 = sbr.rel (0) target = $region25
    $region24: #{tpu_custom_call.1} parent=1 // pred_region
      _
    $region25: #{tpu_custom_call.1} parent=1 // pred_fallthru
      _
    // Predicated region
    $region26: #{tpu_custom_call.1} parent=1 // pred_check
      _
    $region27: #{tpu_custom_call.1} parent=1 // pred_check_branch
      %58 = sbr.rel (0) target = $region29
    $region28: #{tpu_custom_call.1} parent=1 // pred_region
      _
    $region29: #{tpu_custom_call.1} parent=1 // pred_fallthru
      _
    // Predicated region
    $region30: #{tpu_custom_call.1} parent=1 // pred_check
      _
    $region31: #{tpu_custom_call.1} parent=1 // pred_check_branch
      %60 = sbr.rel (0) target = $region33
    $region32: #{tpu_custom_call.1} parent=1 // pred_region
      %s62 = ssub.s32 4096, 4096
      %63 = vsyncadd [#allocation10], %s62
      %s64 = sshll.u32 [#allocation9], 4
      %s65 = int_to_ptr.vmem [resolvable:$true] %s64
      %70 = dma.hbm_to_vmem [thread:$0]  %s7, 4096, %s65, [#allocation10], 128, 128, 8
    $region33: #{tpu_custom_call.1} parent=1 // pred_fallthru
      _
    // Predicated region
    $region34: #{tpu_custom_call.1} parent=1 // pred_check
      _
    $region35: #{tpu_custom_call.1} parent=1 // pred_check_branch
      %72 = sbr.rel (0) target = $region37
    $region36: #{tpu_custom_call.1} parent=1 // pred_region
      _
    $region37: #{tpu_custom_call.1} parent=1 // pred_fallthru
      _
    // Predicated region
    $region38: #{tpu_custom_call.1} parent=1 // pred_check
      _
    $region39: #{tpu_custom_call.1} parent=1 // pred_check_branch
      %74 = sbr.rel (0) target = $region41
    $region40: #{tpu_custom_call.1} parent=1 // pred_region
      _
    $region41: #{tpu_custom_call.1} parent=1 // pred_fallthru
      _
    // Predicated region
    $region42: #{tpu_custom_call.1} parent=1 // pred_check
      _
    $region43: #{tpu_custom_call.1} parent=1 // pred_check_branch
      %76 = sbr.rel (0) target = $region45
    $region44: #{tpu_custom_call.1} parent=1 // pred_region
      %77 = dma.done [#allocation4], 128
    $region45: #{tpu_custom_call.1} parent=1 // pred_fallthru
      _
    // Predicated region
    $region46: #{tpu_custom_call.1} parent=1 // pred_check
      _
    $region47: #{tpu_custom_call.1} parent=1 // pred_check_branch
      %79 = sbr.rel (0) target = $region49
    $region48: #{tpu_custom_call.1} parent=1 // pred_region
      %80 = dma.done [#allocation7], 128
    $region49: #{tpu_custom_call.1} parent=1 // pred_fallthru
      _
    // Predicated region
    $region50: #{tpu_custom_call.1} parent=1 // pred_check
      _
    $region51: #{tpu_custom_call.1} parent=1 // pred_check_branch
      %82 = sbr.rel (0) target = $region53
    $region52: #{tpu_custom_call.1} parent=1 // pred_region
      %83 = dma.done [#allocation7], 2048
    $region53: #{tpu_custom_call.1} parent=1 // pred_fallthru
      _
    // Predicated region
    $region54: #{tpu_custom_call.1} parent=1 // pred_check
      _
    $region55: #{tpu_custom_call.1} parent=1 // pred_check_branch
      %85 = sbr.rel (0) target = $region57
    $region56: #{tpu_custom_call.1} parent=1 // pred_region
      %86 = dma.done [#allocation10], 4096
    $region57: #{tpu_custom_call.1} parent=1 // pred_fallthru
      _
    %v87 = vld [vmem:[#allocation3] sm:$0xff]
    %v88 = vld [vmem:[%s2] sm:$0x1]
    %v89 = vld [vmem:[%s2 + $0x1] sm:$0x1]
    %v90 = vld [vmem:[%s3] sm:$0x1]
    %v91 = vld [vmem:[#allocation8] sm:$0xff]
    %v92 = vld [vmem:[#allocation8 + $0x8] sm:$0xff]
    %v93 = vld [vmem:[#allocation8 + $0x10] sm:$0xff]
    %v94 = vld [vmem:[#allocation8 + $0x18] sm:$0xff]
    %v95 = vld [vmem:[#allocation8 + $0x20] sm:$0xff]
    %v96 = vld [vmem:[#allocation8 + $0x28] sm:$0xff]
    %v97 = vld [vmem:[#allocation8 + $0x30] sm:$0xff]
    %v98 = vld [vmem:[#allocation8 + $0x38] sm:$0xff]
    %v99 = vld [vmem:[#allocation8 + $0x40] sm:$0xff]
    %v100 = vld [vmem:[#allocation8 + $0x48] sm:$0xff]
    %v101 = vld [vmem:[#allocation8 + $0x50] sm:$0xff]
    %v102 = vld [vmem:[#allocation8 + $0x58] sm:$0xff]
    %v103 = vld [vmem:[#allocation8 + $0x60] sm:$0xff]
    %v104 = vld [vmem:[#allocation8 + $0x68] sm:$0xff]
    %v105 = vld [vmem:[#allocation8 + $0x70] sm:$0xff]
    %v106 = vld [vmem:[#allocation8 + $0x78] sm:$0xff]
    %v107 = vld [vmem:[%s5] sm:$0x1]
    %v108 = vld [vmem:[%s6] sm:$0x1]
    %v109 = vld [vmem:[%s8] sm:$0x1]
    %v110 = vld [vmem:[%s9] sm:$0x1]
    %v111 = vld [vmem:[#allocation6] sm:$0xff]
    %112 = vst [vmem:[#allocation2 + $0x8] sm:$0xff] %v111
    %v113 = vld [vmem:[#allocation9] sm:$0xff]
    %v114 = vld [vmem:[#allocation9 + $0x8] sm:$0xff]
    %v115 = vld [vmem:[#allocation9 + $0x10] sm:$0xff]
    %v116 = vld [vmem:[#allocation9 + $0x18] sm:$0xff]
    %v117 = vld [vmem:[#allocation9 + $0x20] sm:$0xff]
    %v118 = vld [vmem:[#allocation9 + $0x28] sm:$0xff]
    %v119 = vld [vmem:[#allocation9 + $0x30] sm:$0xff]
    %v120 = vld [vmem:[#allocation9 + $0x38] sm:$0xff]
    %v121 = vld [vmem:[#allocation9 + $0x40] sm:$0xff]
    %v122 = vld [vmem:[#allocation9 + $0x48] sm:$0xff]
    %v123 = vld [vmem:[#allocation9 + $0x50] sm:$0xff]
    %v124 = vld [vmem:[#allocation9 + $0x58] sm:$0xff]
    %v125 = vld [vmem:[#allocation9 + $0x60] sm:$0xff]
    %v126 = vld [vmem:[#allocation9 + $0x68] sm:$0xff]
    %v127 = vld [vmem:[#allocation9 + $0x70] sm:$0xff]
    %v128 = vld [vmem:[#allocation9 + $0x78] sm:$0xff]
    %v129 = vld [vmem:[#allocation9 + $0x80] sm:$0xff]
    %v130 = vld [vmem:[#allocation9 + $0x88] sm:$0xff]
    %v131 = vld [vmem:[#allocation9 + $0x90] sm:$0xff]
    %v132 = vld [vmem:[#allocation9 + $0x98] sm:$0xff]
    %v133 = vld [vmem:[#allocation9 + $0xa0] sm:$0xff]
    %v134 = vld [vmem:[#allocation9 + $0xa8] sm:$0xff]
    %v135 = vld [vmem:[#allocation9 + $0xb0] sm:$0xff]
    %v136 = vld [vmem:[#allocation9 + $0xb8] sm:$0xff]
    %v137 = vld [vmem:[#allocation9 + $0xc0] sm:$0xff]
    %v138 = vld [vmem:[#allocation9 + $0xc8] sm:$0xff]
    %v139 = vld [vmem:[#allocation9 + $0xd0] sm:$0xff]
    %v140 = vld [vmem:[#allocation9 + $0xd8] sm:$0xff]
    %v141 = vld [vmem:[#allocation9 + $0xe0] sm:$0xff]
    %v142 = vld [vmem:[#allocation9 + $0xe8] sm:$0xff]
    %v143 = vld [vmem:[#allocation9 + $0xf0] sm:$0xff]
    %v144 = vld [vmem:[#allocation9 + $0xf8] sm:$0xff]
    %146 = vrot.lane.b32.xlu0 %v87, 126
    %v147 = vpop.permute.xlu0 %146
    %v149 = vsub.f32 %v87, %v147
    %151 = vset.pattern.permute.xlu0 0
    %152 = vperm.xlu0 %151, %v149
    %v153 = vpop.permute.xlu0 %152
    %v155 = vlaneseq
    %v156 = vshrl.u32 %v155, 7
    %v157 = vsub.s32 0, %v156
    %v158 = vrot.slane %v88, %v157
    %v159 = vmul.f32 %v153, %v158
    %160 = vset.pattern.permute.xlu0 1
    %161 = vperm.xlu0 %160, %v149
    %v162 = vpop.permute.xlu0 %161
    %v164 = vlaneseq
    %v165 = vshrl.u32 %v164, 7
    %v166 = vsub.s32 0, %v165
    %v167 = vrot.slane %v89, %v166
    %v168 = vmul.f32 %v162, %v167
    %v169 = vadd.f32 %v159, %v168
    %v171 = vlaneseq
    %v172 = vshrl.u32 %v171, 7
    %v173 = vsub.s32 0, %v172
    %v174 = vrot.slane %v90, %v173
    %v176 = vadd.f32 %v169, %v174
    %v177 = vmax.f32 %v176, 0.0
    %178 = vmatprep.subr.mxu0 0.0
    %179 = vmatpush1.msra.mxu0 %v91
    %180 = vmatprep.subr.mxu0 0.0
    %181 = vmatpush1.msra.mxu0 %v92
    %182 = vmatprep.subr.mxu0 0.0
    %183 = vmatpush1.msra.mxu0 %v93
    %184 = vmatprep.subr.mxu0 0.0
    %185 = vmatpush1.msra.mxu0 %v94
    %186 = vmatprep.subr.mxu0 0.0
    %187 = vmatpush1.msra.mxu0 %v95
    %188 = vmatprep.subr.mxu0 0.0
    %189 = vmatpush1.msra.mxu0 %v96
    %190 = vmatprep.subr.mxu0 0.0
    %191 = vmatpush1.msra.mxu0 %v97
    %192 = vmatprep.subr.mxu0 0.0
    %193 = vmatpush1.msra.mxu0 %v98
    %194 = vmatprep.subr.mxu0 0.0
    %195 = vmatpush1.msra.mxu0 %v99
    %196 = vmatprep.subr.mxu0 0.0
    %197 = vmatpush1.msra.mxu0 %v100
    %198 = vmatprep.subr.mxu0 0.0
    %199 = vmatpush1.msra.mxu0 %v101
    %200 = vmatprep.subr.mxu0 0.0
    %201 = vmatpush1.msra.mxu0 %v102
    %202 = vmatprep.subr.mxu0 0.0
    %203 = vmatpush1.msra.mxu0 %v103
    %204 = vmatprep.subr.mxu0 0.0
    %205 = vmatpush1.msra.mxu0 %v104
    %206 = vmatprep.subr.mxu0 0.0
    %207 = vmatpush1.msra.mxu0 %v105
    %208 = vmatprep.subr.mxu0 0.0
    %209 = vmatpush1.msra.mxu0 %v106
    %210 = vmatprep.subr.mxu0 0.0
    %211 = vmatpush1.msra.mxu0 0.0
    %212 = vmatprep.subr.mxu0 0.0
    %213 = vmatpush1.msra.mxu0 0.0
    %214 = vmatprep.subr.mxu0 0.0
    %215 = vmatpush1.msra.mxu0 0.0
    %216 = vmatprep.subr.mxu0 0.0
    %217 = vmatpush1.msra.mxu0 0.0
    %218 = vmatprep.subr.mxu0 0.0
    %219 = vmatpush1.msra.mxu0 0.0
    %220 = vmatprep.subr.mxu0 0.0
    %221 = vmatpush1.msra.mxu0 0.0
    %222 = vmatprep.subr.mxu0 0.0
    %223 = vmatpush1.msra.mxu0 0.0
    %224 = vmatprep.subr.mxu0 0.0
    %225 = vmatpush1.msra.mxu0 0.0
    %226 = vmatprep.subr.mxu0 0.0
    %227 = vmatpush1.msra.mxu0 0.0
    %228 = vmatprep.subr.mxu0 0.0
    %229 = vmatpush1.msra.mxu0 0.0
    %230 = vmatprep.subr.mxu0 0.0
    %231 = vmatpush1.msra.mxu0 0.0
    %232 = vmatprep.subr.mxu0 0.0
    %233 = vmatpush1.msra.mxu0 0.0
    %234 = vmatprep.subr.mxu0 0.0
    %235 = vmatpush1.msra.mxu0 0.0
    %236 = vmatprep.subr.mxu0 0.0
    %237 = vmatpush1.msra.mxu0 0.0
    %238 = vmatprep.subr.mxu0 0.0
    %239 = vmatpush1.msra.mxu0 0.0
    %240 = vmatprep.subr.mxu0 0.0
    %241 = vmatpush1.msra.mxu0 0.0
    %242 = vmatprep.mubr.f32.mxu0 0.0
    %243 = vmatmul.mubr.f32.gmra.mrb[0].mxu0 %v177
    %v244 = vpop.f32.mrb[0].mxu0
    %v245 = vadd.f32 0.0, %v244
    %v246 = vpop.f32.mrb[0].mxu0
    %247 = vdwg.mxu0
    %248 = vadd.xlane.f32.xlu0 %v245
    %v249 = vpop.xlane.xlu0 %248
    %v250 = vmul.f32 %v249, 0.03125
    %v251 = vmul.f32 %v245, %v245
    %252 = vadd.xlane.f32.xlu0 %v251
    %v253 = vpop.xlane.xlu0 %252
    %v254 = vmul.f32 %v253, 0.03125
    %v255 = vmul.f32 %v250, %v250
    %v256 = vsub.f32 %v254, %v255
    %v257 = vmax.f32 %v256, 0.0
    %v258 = vsub.f32 %v245, %v250
    %v259 = vadd.f32 %v257, 1e-05
    %v260 = vrsqrt.pop %v259
    %v261 = vmul.f32 %v258, %v260
    %v263 = vlaneseq
    %v264 = vshrl.u32 %v263, 7
    %v265 = vsub.s32 0, %v264
    %v266 = vrot.slane %v107, %v265
    %v268 = vmul.f32 %v261, %v266
    %v270 = vlaneseq
    %v271 = vshrl.u32 %v270, 7
    %v272 = vsub.s32 0, %v271
    %v273 = vrot.slane %v108, %v272
    %v275 = vadd.f32 %v268, %v273
    %v276 = vmax.f32 %v275, 0.0
    %277 = vst [vmem:[#allocation2] sm:$0xff] %v276
    %v278 = vld [vmem:[#allocation2] sm:$0xff]
    %v279 = vld [vmem:[#allocation2 + $0x8] sm:$0xff]
    %280 = vmatprep.subr.mxu0 0.0
    %281 = vmatpush1.msra.mxu0 %v113
    %282 = vmatprep.subr.mxu0 0.0
    %283 = vmatpush1.msra.mxu0 %v114
    %284 = vmatprep.subr.mxu0 0.0
    %285 = vmatpush1.msra.mxu0 %v115
    %286 = vmatprep.subr.mxu0 0.0
    %287 = vmatpush1.msra.mxu0 %v116
    %288 = vmatprep.subr.mxu0 0.0
    %289 = vmatpush1.msra.mxu0 %v117
    %290 = vmatprep.subr.mxu0 0.0
    %291 = vmatpush1.msra.mxu0 %v118
    %292 = vmatprep.subr.mxu0 0.0
    %293 = vmatpush1.msra.mxu0 %v119
    %294 = vmatprep.subr.mxu0 0.0
    %295 = vmatpush1.msra.mxu0 %v120
    %296 = vmatprep.subr.mxu0 0.0
    %297 = vmatpush1.msra.mxu0 %v121
    %298 = vmatprep.subr.mxu0 0.0
    %299 = vmatpush1.msra.mxu0 %v122
    %300 = vmatprep.subr.mxu0 0.0
    %301 = vmatpush1.msra.mxu0 %v123
    %302 = vmatprep.subr.mxu0 0.0
    %303 = vmatpush1.msra.mxu0 %v124
    %304 = vmatprep.subr.mxu0 0.0
    %305 = vmatpush1.msra.mxu0 %v125
    %306 = vmatprep.subr.mxu0 0.0
    %307 = vmatpush1.msra.mxu0 %v126
    %308 = vmatprep.subr.mxu0 0.0
    %309 = vmatpush1.msra.mxu0 %v127
    %310 = vmatprep.subr.mxu0 0.0
    %311 = vmatpush1.msra.mxu0 %v128
    %312 = vmatprep.subr.mxu0 0.0
    %313 = vmatpush1.msra.mxu0 %v129
    %314 = vmatprep.subr.mxu0 0.0
    %315 = vmatpush1.msra.mxu0 %v130
    %316 = vmatprep.subr.mxu0 0.0
    %317 = vmatpush1.msra.mxu0 %v131
    %318 = vmatprep.subr.mxu0 0.0
    %319 = vmatpush1.msra.mxu0 %v132
    %320 = vmatprep.subr.mxu0 0.0
    %321 = vmatpush1.msra.mxu0 %v133
    %322 = vmatprep.subr.mxu0 0.0
    %323 = vmatpush1.msra.mxu0 %v134
    %324 = vmatprep.subr.mxu0 0.0
    %325 = vmatpush1.msra.mxu0 %v135
    %326 = vmatprep.subr.mxu0 0.0
    %327 = vmatpush1.msra.mxu0 %v136
    %328 = vmatprep.subr.mxu0 0.0
    %329 = vmatpush1.msra.mxu0 %v137
    %330 = vmatprep.subr.mxu0 0.0
    %331 = vmatpush1.msra.mxu0 %v138
    %332 = vmatprep.subr.mxu0 0.0
    %333 = vmatpush1.msra.mxu0 %v139
    %334 = vmatprep.subr.mxu0 0.0
    %335 = vmatpush1.msra.mxu0 %v140
    %336 = vmatprep.subr.mxu0 0.0
    %337 = vmatpush1.msra.mxu0 %v141
    %338 = vmatprep.subr.mxu0 0.0
    %339 = vmatpush1.msra.mxu0 %v142
    %340 = vmatprep.subr.mxu0 0.0
    %341 = vmatpush1.msra.mxu0 %v143
    %342 = vmatprep.subr.mxu0 0.0
    %343 = vmatpush1.msra.mxu0 %v144
    %344 = vmatprep.mubr.f32.mxu0 %v279
    %345 = vmatmul.mubr.f32.gmra.mrb[0].mxu0 %v278
    %v346 = vpop.f32.mrb[0].mxu0
    %v347 = vadd.f32 0.0, %v346
    %v348 = vpop.f32.mrb[0].mxu0
    %349 = vdwg.mxu0
    %350 = vadd.xlane.f32.xlu0 %v347
    %v351 = vpop.xlane.xlu0 %350
    %v352 = vmul.f32 %v351, 0.03125
    %v353 = vmul.f32 %v347, %v347
    %354 = vadd.xlane.f32.xlu0 %v353
    %v355 = vpop.xlane.xlu0 %354
    %v356 = vmul.f32 %v355, 0.03125
    %v357 = vmul.f32 %v352, %v352
    %v358 = vsub.f32 %v356, %v357
    %v359 = vmax.f32 %v358, 0.0
    %v360 = vsub.f32 %v347, %v352
    %v361 = vadd.f32 %v359, 1e-05
    %v362 = vrsqrt.pop %v361
    %v363 = vmul.f32 %v360, %v362
    %v365 = vlaneseq
    %v366 = vshrl.u32 %v365, 7
    %v367 = vsub.s32 0, %v366
    %v368 = vrot.slane %v109, %v367
    %v370 = vmul.f32 %v363, %v368
    %v372 = vlaneseq
    %v373 = vshrl.u32 %v372, 7
    %v374 = vsub.s32 0, %v373
    %v375 = vrot.slane %v110, %v374
    %v377 = vadd.f32 %v370, %v375
    %v378 = vmax.f32 %v377, 0.0
    %379 = vst [vmem:[#allocation11] sm:$0xff] %v378
    %380 = vrot.lane.b32.xlu0 %v87, 124
    %v381 = vpop.permute.xlu0 %380
    %v383 = vsub.f32 %v87, %v381
    %385 = vset.pattern.permute.xlu0 0
    %386 = vperm.xlu0 %385, %v383
    %v387 = vpop.permute.xlu0 %386
    %v389 = vmul.f32 %v387, %v158
    %390 = vset.pattern.permute.xlu0 1
    %391 = vperm.xlu0 %390, %v383
    %v392 = vpop.permute.xlu0 %391
    %v394 = vmul.f32 %v392, %v167
    %v395 = vadd.f32 %v389, %v394
    %v396 = vadd.f32 %v395, %v174
    %v397 = vmax.f32 %v396, 0.0
    %398 = vmatprep.subr.mxu0 0.0
    %399 = vmatpush1.msra.mxu0 %v91
    %400 = vmatprep.subr.mxu0 0.0
    %401 = vmatpush1.msra.mxu0 %v92
    %402 = vmatprep.subr.mxu0 0.0
    %403 = vmatpush1.msra.mxu0 %v93
    %404 = vmatprep.subr.mxu0 0.0
    %405 = vmatpush1.msra.mxu0 %v94
    %406 = vmatprep.subr.mxu0 0.0
    %407 = vmatpush1.msra.mxu0 %v95
    %408 = vmatprep.subr.mxu0 0.0
    %409 = vmatpush1.msra.mxu0 %v96
    %410 = vmatprep.subr.mxu0 0.0
    %411 = vmatpush1.msra.mxu0 %v97
    %412 = vmatprep.subr.mxu0 0.0
    %413 = vmatpush1.msra.mxu0 %v98
    %414 = vmatprep.subr.mxu0 0.0
    %415 = vmatpush1.msra.mxu0 %v99
    %416 = vmatprep.subr.mxu0 0.0
    %417 = vmatpush1.msra.mxu0 %v100
    %418 = vmatprep.subr.mxu0 0.0
    %419 = vmatpush1.msra.mxu0 %v101
    %420 = vmatprep.subr.mxu0 0.0
    %421 = vmatpush1.msra.mxu0 %v102
    %422 = vmatprep.subr.mxu0 0.0
    %423 = vmatpush1.msra.mxu0 %v103
    %424 = vmatprep.subr.mxu0 0.0
    %425 = vmatpush1.msra.mxu0 %v104
    %426 = vmatprep.subr.mxu0 0.0
    %427 = vmatpush1.msra.mxu0 %v105
    %428 = vmatprep.subr.mxu0 0.0
    %429 = vmatpush1.msra.mxu0 %v106
    %430 = vmatprep.subr.mxu0 0.0
    %431 = vmatpush1.msra.mxu0 0.0
    %432 = vmatprep.subr.mxu0 0.0
    %433 = vmatpush1.msra.mxu0 0.0
    %434 = vmatprep.subr.mxu0 0.0
    %435 = vmatpush1.msra.mxu0 0.0
    %436 = vmatprep.subr.mxu0 0.0
    %437 = vmatpush1.msra.mxu0 0.0
    %438 = vmatprep.subr.mxu0 0.0
    %439 = vmatpush1.msra.mxu0 0.0
    %440 = vmatprep.subr.mxu0 0.0
    %441 = vmatpush1.msra.mxu0 0.0
    %442 = vmatprep.subr.mxu0 0.0
    %443 = vmatpush1.msra.mxu0 0.0
    %444 = vmatprep.subr.mxu0 0.0
    %445 = vmatpush1.msra.mxu0 0.0
    %446 = vmatprep.subr.mxu0 0.0
    %447 = vmatpush1.msra.mxu0 0.0
    %448 = vmatprep.subr.mxu0 0.0
    %449 = vmatpush1.msra.mxu0 0.0
    %450 = vmatprep.subr.mxu0 0.0
    %451 = vmatpush1.msra.mxu0 0.0
    %452 = vmatprep.subr.mxu0 0.0
    %453 = vmatpush1.msra.mxu0 0.0
    %454 = vmatprep.subr.mxu0 0.0
    %455 = vmatpush1.msra.mxu0 0.0
    %456 = vmatprep.subr.mxu0 0.0
    %457 = vmatpush1.msra.mxu0 0.0
    %458 = vmatprep.subr.mxu0 0.0
    %459 = vmatpush1.msra.mxu0 0.0
    %460 = vmatprep.subr.mxu0 0.0
    %461 = vmatpush1.msra.mxu0 0.0
    %462 = vmatprep.mubr.f32.mxu0 0.0
    %463 = vmatmul.mubr.f32.gmra.mrb[0].mxu0 %v397
    %v464 = vpop.f32.mrb[0].mxu0
    %v465 = vadd.f32 0.0, %v464
    %v466 = vpop.f32.mrb[0].mxu0
    %467 = vdwg.mxu0
    %468 = vadd.xlane.f32.xlu0 %v465
    %v469 = vpop.xlane.xlu0 %468
    %v470 = vmul.f32 %v469, 0.03125
    %v471 = vmul.f32 %v465, %v465
    %472 = vadd.xlane.f32.xlu0 %v471
    %v473 = vpop.xlane.xlu0 %472
    %v474 = vmul.f32 %v473, 0.03125
    %v475 = vmul.f32 %v470, %v470
    %v476 = vsub.f32 %v474, %v475
    %v477 = vmax.f32 %v476, 0.0
    %v478 = vsub.f32 %v465, %v470
    %v479 = vadd.f32 %v477, 1e-05
    %v480 = vrsqrt.pop %v479
    %v481 = vmul.f32 %v478, %v480
    %v482 = vmul.f32 %v481, %v266
    %v483 = vadd.f32 %v482, %v273
    %v484 = vmax.f32 %v483, 0.0
    %485 = vst [vmem:[#allocation2] sm:$0xff] %v484
    %v486 = vld [vmem:[#allocation2] sm:$0xff]
    %v487 = vld [vmem:[#allocation2 + $0x8] sm:$0xff]
    %488 = vmatprep.subr.mxu0 0.0
    %489 = vmatpush1.msra.mxu0 %v113
    %490 = vmatprep.subr.mxu0 0.0
    %491 = vmatpush1.msra.mxu0 %v114
    %492 = vmatprep.subr.mxu0 0.0
    %493 = vmatpush1.msra.mxu0 %v115
    %494 = vmatprep.subr.mxu0 0.0
    %495 = vmatpush1.msra.mxu0 %v116
    %496 = vmatprep.subr.mxu0 0.0
    %497 = vmatpush1.msra.mxu0 %v117
    %498 = vmatprep.subr.mxu0 0.0
    %499 = vmatpush1.msra.mxu0 %v118
    %500 = vmatprep.subr.mxu0 0.0
    %501 = vmatpush1.msra.mxu0 %v119
    %502 = vmatprep.subr.mxu0 0.0
    %503 = vmatpush1.msra.mxu0 %v120
    %504 = vmatprep.subr.mxu0 0.0
    %505 = vmatpush1.msra.mxu0 %v121
    %506 = vmatprep.subr.mxu0 0.0
    %507 = vmatpush1.msra.mxu0 %v122
    %508 = vmatprep.subr.mxu0 0.0
    %509 = vmatpush1.msra.mxu0 %v123
    %510 = vmatprep.subr.mxu0 0.0
    %511 = vmatpush1.msra.mxu0 %v124
    %512 = vmatprep.subr.mxu0 0.0
    %513 = vmatpush1.msra.mxu0 %v125
    %514 = vmatprep.subr.mxu0 0.0
    %515 = vmatpush1.msra.mxu0 %v126
    %516 = vmatprep.subr.mxu0 0.0
    %517 = vmatpush1.msra.mxu0 %v127
    %518 = vmatprep.subr.mxu0 0.0
    %519 = vmatpush1.msra.mxu0 %v128
    %520 = vmatprep.subr.mxu0 0.0
    %521 = vmatpush1.msra.mxu0 %v129
    %522 = vmatprep.subr.mxu0 0.0
    %523 = vmatpush1.msra.mxu0 %v130
    %524 = vmatprep.subr.mxu0 0.0
    %525 = vmatpush1.msra.mxu0 %v131
    %526 = vmatprep.subr.mxu0 0.0
    %527 = vmatpush1.msra.mxu0 %v132
    %528 = vmatprep.subr.mxu0 0.0
    %529 = vmatpush1.msra.mxu0 %v133
    %530 = vmatprep.subr.mxu0 0.0
    %531 = vmatpush1.msra.mxu0 %v134
    %532 = vmatprep.subr.mxu0 0.0
    %533 = vmatpush1.msra.mxu0 %v135
    %534 = vmatprep.subr.mxu0 0.0
    %535 = vmatpush1.msra.mxu0 %v136
    %536 = vmatprep.subr.mxu0 0.0
    %537 = vmatpush1.msra.mxu0 %v137
    %538 = vmatprep.subr.mxu0 0.0
    %539 = vmatpush1.msra.mxu0 %v138
    %540 = vmatprep.subr.mxu0 0.0
    %541 = vmatpush1.msra.mxu0 %v139
    %542 = vmatprep.subr.mxu0 0.0
    %543 = vmatpush1.msra.mxu0 %v140
    %544 = vmatprep.subr.mxu0 0.0
    %545 = vmatpush1.msra.mxu0 %v141
    %546 = vmatprep.subr.mxu0 0.0
    %547 = vmatpush1.msra.mxu0 %v142
    %548 = vmatprep.subr.mxu0 0.0
    %549 = vmatpush1.msra.mxu0 %v143
    %550 = vmatprep.subr.mxu0 0.0
    %551 = vmatpush1.msra.mxu0 %v144
    %552 = vmatprep.mubr.f32.mxu0 %v487
    %553 = vmatmul.mubr.f32.gmra.mrb[0].mxu0 %v486
    %v554 = vpop.f32.mrb[0].mxu0
    %v555 = vadd.f32 0.0, %v554
    %v556 = vpop.f32.mrb[0].mxu0
    %557 = vdwg.mxu0
    %558 = vadd.xlane.f32.xlu0 %v555
    %v559 = vpop.xlane.xlu0 %558
    %v560 = vmul.f32 %v559, 0.03125
    %v561 = vmul.f32 %v555, %v555
    %562 = vadd.xlane.f32.xlu0 %v561
    %v563 = vpop.xlane.xlu0 %562
    %v564 = vmul.f32 %v563, 0.03125
    %v565 = vmul.f32 %v560, %v560
    %v566 = vsub.f32 %v564, %v565
    %v567 = vmax.f32 %v566, 0.0
    %v568 = vsub.f32 %v555, %v560
    %v569 = vadd.f32 %v567, 1e-05
    %v570 = vrsqrt.pop %v569
    %v571 = vmul.f32 %v568, %v570
    %v572 = vmul.f32 %v571, %v368
    %v573 = vadd.f32 %v572, %v375
    %v574 = vmax.f32 %v573, 0.0
    %575 = vst [vmem:[#allocation11 + $0x8] sm:$0xff] %v574
    %576 = vrot.lane.b32.xlu0 %v87, 122
    %v577 = vpop.permute.xlu0 %576
    %v579 = vsub.f32 %v87, %v577
    %581 = vset.pattern.permute.xlu0 0
    %582 = vperm.xlu0 %581, %v579
    %v583 = vpop.permute.xlu0 %582
    %v585 = vmul.f32 %v583, %v158
    %586 = vset.pattern.permute.xlu0 1
    %587 = vperm.xlu0 %586, %v579
    %v588 = vpop.permute.xlu0 %587
    %v590 = vmul.f32 %v588, %v167
    %v591 = vadd.f32 %v585, %v590
    %v592 = vadd.f32 %v591, %v174
    %v593 = vmax.f32 %v592, 0.0
    %594 = vmatprep.subr.mxu0 0.0
    %595 = vmatpush1.msra.mxu0 %v91
    %596 = vmatprep.subr.mxu0 0.0
    %597 = vmatpush1.msra.mxu0 %v92
    %598 = vmatprep.subr.mxu0 0.0
    %599 = vmatpush1.msra.mxu0 %v93
    %600 = vmatprep.subr.mxu0 0.0
    %601 = vmatpush1.msra.mxu0 %v94
    %602 = vmatprep.subr.mxu0 0.0
    %603 = vmatpush1.msra.mxu0 %v95
    %604 = vmatprep.subr.mxu0 0.0
    %605 = vmatpush1.msra.mxu0 %v96
    %606 = vmatprep.subr.mxu0 0.0
    %607 = vmatpush1.msra.mxu0 %v97
    %608 = vmatprep.subr.mxu0 0.0
    %609 = vmatpush1.msra.mxu0 %v98
    %610 = vmatprep.subr.mxu0 0.0
    %611 = vmatpush1.msra.mxu0 %v99
    %612 = vmatprep.subr.mxu0 0.0
    %613 = vmatpush1.msra.mxu0 %v100
    %614 = vmatprep.subr.mxu0 0.0
    %615 = vmatpush1.msra.mxu0 %v101
    %616 = vmatprep.subr.mxu0 0.0
    %617 = vmatpush1.msra.mxu0 %v102
    %618 = vmatprep.subr.mxu0 0.0
    %619 = vmatpush1.msra.mxu0 %v103
    %620 = vmatprep.subr.mxu0 0.0
    %621 = vmatpush1.msra.mxu0 %v104
    %622 = vmatprep.subr.mxu0 0.0
    %623 = vmatpush1.msra.mxu0 %v105
    %624 = vmatprep.subr.mxu0 0.0
    %625 = vmatpush1.msra.mxu0 %v106
    %626 = vmatprep.subr.mxu0 0.0
    %627 = vmatpush1.msra.mxu0 0.0
    %628 = vmatprep.subr.mxu0 0.0
    %629 = vmatpush1.msra.mxu0 0.0
    %630 = vmatprep.subr.mxu0 0.0
    %631 = vmatpush1.msra.mxu0 0.0
    %632 = vmatprep.subr.mxu0 0.0
    %633 = vmatpush1.msra.mxu0 0.0
    %634 = vmatprep.subr.mxu0 0.0
    %635 = vmatpush1.msra.mxu0 0.0
    %636 = vmatprep.subr.mxu0 0.0
    %637 = vmatpush1.msra.mxu0 0.0
    %638 = vmatprep.subr.mxu0 0.0
    %639 = vmatpush1.msra.mxu0 0.0
    %640 = vmatprep.subr.mxu0 0.0
    %641 = vmatpush1.msra.mxu0 0.0
    %642 = vmatprep.subr.mxu0 0.0
    %643 = vmatpush1.msra.mxu0 0.0
    %644 = vmatprep.subr.mxu0 0.0
    %645 = vmatpush1.msra.mxu0 0.0
    %646 = vmatprep.subr.mxu0 0.0
    %647 = vmatpush1.msra.mxu0 0.0
    %648 = vmatprep.subr.mxu0 0.0
    %649 = vmatpush1.msra.mxu0 0.0
    %650 = vmatprep.subr.mxu0 0.0
    %651 = vmatpush1.msra.mxu0 0.0
    %652 = vmatprep.subr.mxu0 0.0
    %653 = vmatpush1.msra.mxu0 0.0
    %654 = vmatprep.subr.mxu0 0.0
    %655 = vmatpush1.msra.mxu0 0.0
    %656 = vmatprep.subr.mxu0 0.0
    %657 = vmatpush1.msra.mxu0 0.0
    %658 = vmatprep.mubr.f32.mxu0 0.0
    %659 = vmatmul.mubr.f32.gmra.mrb[0].mxu0 %v593
    %v660 = vpop.f32.mrb[0].mxu0
    %v661 = vadd.f32 0.0, %v660
    %v662 = vpop.f32.mrb[0].mxu0
    %663 = vdwg.mxu0
    %664 = vadd.xlane.f32.xlu0 %v661
    %v665 = vpop.xlane.xlu0 %664
    %v666 = vmul.f32 %v665, 0.03125
    %v667 = vmul.f32 %v661, %v661
    %668 = vadd.xlane.f32.xlu0 %v667
    %v669 = vpop.xlane.xlu0 %668
    %v670 = vmul.f32 %v669, 0.03125
    %v671 = vmul.f32 %v666, %v666
    %v672 = vsub.f32 %v670, %v671
    %v673 = vmax.f32 %v672, 0.0
    %v674 = vsub.f32 %v661, %v666
    %v675 = vadd.f32 %v673, 1e-05
    %v676 = vrsqrt.pop %v675
    %v677 = vmul.f32 %v674, %v676
    %v678 = vmul.f32 %v677, %v266
    %v679 = vadd.f32 %v678, %v273
    %v680 = vmax.f32 %v679, 0.0
    %681 = vst [vmem:[#allocation2] sm:$0xff] %v680
    %v682 = vld [vmem:[#allocation2] sm:$0xff]
    %v683 = vld [vmem:[#allocation2 + $0x8] sm:$0xff]
    %684 = vmatprep.subr.mxu0 0.0
    %685 = vmatpush1.msra.mxu0 %v113
    %686 = vmatprep.subr.mxu0 0.0
    %687 = vmatpush1.msra.mxu0 %v114
    %688 = vmatprep.subr.mxu0 0.0
    %689 = vmatpush1.msra.mxu0 %v115
    %690 = vmatprep.subr.mxu0 0.0
    %691 = vmatpush1.msra.mxu0 %v116
    %692 = vmatprep.subr.mxu0 0.0
    %693 = vmatpush1.msra.mxu0 %v117
    %694 = vmatprep.subr.mxu0 0.0
    %695 = vmatpush1.msra.mxu0 %v118
    %696 = vmatprep.subr.mxu0 0.0
    %697 = vmatpush1.msra.mxu0 %v119
    %698 = vmatprep.subr.mxu0 0.0
    %699 = vmatpush1.msra.mxu0 %v120
    %700 = vmatprep.subr.mxu0 0.0
    %701 = vmatpush1.msra.mxu0 %v121
    %702 = vmatprep.subr.mxu0 0.0
    %703 = vmatpush1.msra.mxu0 %v122
    %704 = vmatprep.subr.mxu0 0.0
    %705 = vmatpush1.msra.mxu0 %v123
    %706 = vmatprep.subr.mxu0 0.0
    %707 = vmatpush1.msra.mxu0 %v124
    %708 = vmatprep.subr.mxu0 0.0
    %709 = vmatpush1.msra.mxu0 %v125
    %710 = vmatprep.subr.mxu0 0.0
    %711 = vmatpush1.msra.mxu0 %v126
    %712 = vmatprep.subr.mxu0 0.0
    %713 = vmatpush1.msra.mxu0 %v127
    %714 = vmatprep.subr.mxu0 0.0
    %715 = vmatpush1.msra.mxu0 %v128
    %716 = vmatprep.subr.mxu0 0.0
    %717 = vmatpush1.msra.mxu0 %v129
    %718 = vmatprep.subr.mxu0 0.0
    %719 = vmatpush1.msra.mxu0 %v130
    %720 = vmatprep.subr.mxu0 0.0
    %721 = vmatpush1.msra.mxu0 %v131
    %722 = vmatprep.subr.mxu0 0.0
    %723 = vmatpush1.msra.mxu0 %v132
    %724 = vmatprep.subr.mxu0 0.0
    %725 = vmatpush1.msra.mxu0 %v133
    %726 = vmatprep.subr.mxu0 0.0
    %727 = vmatpush1.msra.mxu0 %v134
    %728 = vmatprep.subr.mxu0 0.0
    %729 = vmatpush1.msra.mxu0 %v135
    %730 = vmatprep.subr.mxu0 0.0
    %731 = vmatpush1.msra.mxu0 %v136
    %732 = vmatprep.subr.mxu0 0.0
    %733 = vmatpush1.msra.mxu0 %v137
    %734 = vmatprep.subr.mxu0 0.0
    %735 = vmatpush1.msra.mxu0 %v138
    %736 = vmatprep.subr.mxu0 0.0
    %737 = vmatpush1.msra.mxu0 %v139
    %738 = vmatprep.subr.mxu0 0.0
    %739 = vmatpush1.msra.mxu0 %v140
    %740 = vmatprep.subr.mxu0 0.0
    %741 = vmatpush1.msra.mxu0 %v141
    %742 = vmatprep.subr.mxu0 0.0
    %743 = vmatpush1.msra.mxu0 %v142
    %744 = vmatprep.subr.mxu0 0.0
    %745 = vmatpush1.msra.mxu0 %v143
    %746 = vmatprep.subr.mxu0 0.0
    %747 = vmatpush1.msra.mxu0 %v144
    %748 = vmatprep.mubr.f32.mxu0 %v683
    %749 = vmatmul.mubr.f32.gmra.mrb[0].mxu0 %v682
    %v750 = vpop.f32.mrb[0].mxu0
    %v751 = vadd.f32 0.0, %v750
    %v752 = vpop.f32.mrb[0].mxu0
    %753 = vdwg.mxu0
    %754 = vadd.xlane.f32.xlu0 %v751
    %v755 = vpop.xlane.xlu0 %754
    %v756 = vmul.f32 %v755, 0.03125
    %v757 = vmul.f32 %v751, %v751
    %758 = vadd.xlane.f32.xlu0 %v757
    %v759 = vpop.xlane.xlu0 %758
    %v760 = vmul.f32 %v759, 0.03125
    %v761 = vmul.f32 %v756, %v756
    %v762 = vsub.f32 %v760, %v761
    %v763 = vmax.f32 %v762, 0.0
    %v764 = vsub.f32 %v751, %v756
    %v765 = vadd.f32 %v763, 1e-05
    %v766 = vrsqrt.pop %v765
    %v767 = vmul.f32 %v764, %v766
    %v768 = vmul.f32 %v767, %v368
    %v769 = vadd.f32 %v768, %v375
    %v770 = vmax.f32 %v769, 0.0
    %771 = vst [vmem:[#allocation11 + $0x10] sm:$0xff] %v770
    %772 = vrot.lane.b32.xlu0 %v87, 120
    %v773 = vpop.permute.xlu0 %772
    %v775 = vsub.f32 %v87, %v773
    %777 = vset.pattern.permute.xlu0 0
    %778 = vperm.xlu0 %777, %v775
    %v779 = vpop.permute.xlu0 %778
    %v781 = vmul.f32 %v779, %v158
    %782 = vset.pattern.permute.xlu0 1
    %783 = vperm.xlu0 %782, %v775
    %v784 = vpop.permute.xlu0 %783
    %v786 = vmul.f32 %v784, %v167
    %v787 = vadd.f32 %v781, %v786
    %v788 = vadd.f32 %v787, %v174
    %v789 = vmax.f32 %v788, 0.0
    %790 = vmatprep.subr.mxu0 0.0
    %791 = vmatpush1.msra.mxu0 %v91
    %792 = vmatprep.subr.mxu0 0.0
    %793 = vmatpush1.msra.mxu0 %v92
    %794 = vmatprep.subr.mxu0 0.0
    %795 = vmatpush1.msra.mxu0 %v93
    %796 = vmatprep.subr.mxu0 0.0
    %797 = vmatpush1.msra.mxu0 %v94
    %798 = vmatprep.subr.mxu0 0.0
    %799 = vmatpush1.msra.mxu0 %v95
    %800 = vmatprep.subr.mxu0 0.0
    %801 = vmatpush1.msra.mxu0 %v96
    %802 = vmatprep.subr.mxu0 0.0
    %803 = vmatpush1.msra.mxu0 %v97
    %804 = vmatprep.subr.mxu0 0.0
    %805 = vmatpush1.msra.mxu0 %v98
    %806 = vmatprep.subr.mxu0 0.0
    %807 = vmatpush1.msra.mxu0 %v99
    %808 = vmatprep.subr.mxu0 0.0
    %809 = vmatpush1.msra.mxu0 %v100
    %810 = vmatprep.subr.mxu0 0.0
    %811 = vmatpush1.msra.mxu0 %v101
    %812 = vmatprep.subr.mxu0 0.0
    %813 = vmatpush1.msra.mxu0 %v102
    %814 = vmatprep.subr.mxu0 0.0
    %815 = vmatpush1.msra.mxu0 %v103
    %816 = vmatprep.subr.mxu0 0.0
    %817 = vmatpush1.msra.mxu0 %v104
    %818 = vmatprep.subr.mxu0 0.0
    %819 = vmatpush1.msra.mxu0 %v105
    %820 = vmatprep.subr.mxu0 0.0
    %821 = vmatpush1.msra.mxu0 %v106
    %822 = vmatprep.subr.mxu0 0.0
    %823 = vmatpush1.msra.mxu0 0.0
    %824 = vmatprep.subr.mxu0 0.0
    %825 = vmatpush1.msra.mxu0 0.0
    %826 = vmatprep.subr.mxu0 0.0
    %827 = vmatpush1.msra.mxu0 0.0
    %828 = vmatprep.subr.mxu0 0.0
    %829 = vmatpush1.msra.mxu0 0.0
    %830 = vmatprep.subr.mxu0 0.0
    %831 = vmatpush1.msra.mxu0 0.0
    %832 = vmatprep.subr.mxu0 0.0
    %833 = vmatpush1.msra.mxu0 0.0
    %834 = vmatprep.subr.mxu0 0.0
    %835 = vmatpush1.msra.mxu0 0.0
    %836 = vmatprep.subr.mxu0 0.0
    %837 = vmatpush1.msra.mxu0 0.0
    %838 = vmatprep.subr.mxu0 0.0
    %839 = vmatpush1.msra.mxu0 0.0
    %840 = vmatprep.subr.mxu0 0.0
    %841 = vmatpush1.msra.mxu0 0.0
    %842 = vmatprep.subr.mxu0 0.0
    %843 = vmatpush1.msra.mxu0 0.0
    %844 = vmatprep.subr.mxu0 0.0
    %845 = vmatpush1.msra.mxu0 0.0
    %846 = vmatprep.subr.mxu0 0.0
    %847 = vmatpush1.msra.mxu0 0.0
    %848 = vmatprep.subr.mxu0 0.0
    %849 = vmatpush1.msra.mxu0 0.0
    %850 = vmatprep.subr.mxu0 0.0
    %851 = vmatpush1.msra.mxu0 0.0
    %852 = vmatprep.subr.mxu0 0.0
    %853 = vmatpush1.msra.mxu0 0.0
    %854 = vmatprep.mubr.f32.mxu0 0.0
    %855 = vmatmul.mubr.f32.gmra.mrb[0].mxu0 %v789
    %v856 = vpop.f32.mrb[0].mxu0
    %v857 = vadd.f32 0.0, %v856
    %v858 = vpop.f32.mrb[0].mxu0
    %859 = vdwg.mxu0
    %860 = vadd.xlane.f32.xlu0 %v857
    %v861 = vpop.xlane.xlu0 %860
    %v862 = vmul.f32 %v861, 0.03125
    %v863 = vmul.f32 %v857, %v857
    %864 = vadd.xlane.f32.xlu0 %v863
    %v865 = vpop.xlane.xlu0 %864
    %v866 = vmul.f32 %v865, 0.03125
    %v867 = vmul.f32 %v862, %v862
    %v868 = vsub.f32 %v866, %v867
    %v869 = vmax.f32 %v868, 0.0
    %v870 = vsub.f32 %v857, %v862
    %v871 = vadd.f32 %v869, 1e-05
    %v872 = vrsqrt.pop %v871
    %v873 = vmul.f32 %v870, %v872
    %v874 = vmul.f32 %v873, %v266
    %v875 = vadd.f32 %v874, %v273
    %v876 = vmax.f32 %v875, 0.0
    %877 = vst [vmem:[#allocation2] sm:$0xff] %v876
    %v878 = vld [vmem:[#allocation2] sm:$0xff]
    %v879 = vld [vmem:[#allocation2 + $0x8] sm:$0xff]
    %880 = vmatprep.subr.mxu0 0.0
    %881 = vmatpush1.msra.mxu0 %v113
    %882 = vmatprep.subr.mxu0 0.0
    %883 = vmatpush1.msra.mxu0 %v114
    %884 = vmatprep.subr.mxu0 0.0
    %885 = vmatpush1.msra.mxu0 %v115
    %886 = vmatprep.subr.mxu0 0.0
    %887 = vmatpush1.msra.mxu0 %v116
    %888 = vmatprep.subr.mxu0 0.0
    %889 = vmatpush1.msra.mxu0 %v117
    %890 = vmatprep.subr.mxu0 0.0
    %891 = vmatpush1.msra.mxu0 %v118
    %892 = vmatprep.subr.mxu0 0.0
    %893 = vmatpush1.msra.mxu0 %v119
    %894 = vmatprep.subr.mxu0 0.0
    %895 = vmatpush1.msra.mxu0 %v120
    %896 = vmatprep.subr.mxu0 0.0
    %897 = vmatpush1.msra.mxu0 %v121
    %898 = vmatprep.subr.mxu0 0.0
    %899 = vmatpush1.msra.mxu0 %v122
    %900 = vmatprep.subr.mxu0 0.0
    %901 = vmatpush1.msra.mxu0 %v123
    %902 = vmatprep.subr.mxu0 0.0
    %903 = vmatpush1.msra.mxu0 %v124
    %904 = vmatprep.subr.mxu0 0.0
    %905 = vmatpush1.msra.mxu0 %v125
    %906 = vmatprep.subr.mxu0 0.0
    %907 = vmatpush1.msra.mxu0 %v126
    %908 = vmatprep.subr.mxu0 0.0
    %909 = vmatpush1.msra.mxu0 %v127
    %910 = vmatprep.subr.mxu0 0.0
    %911 = vmatpush1.msra.mxu0 %v128
    %912 = vmatprep.subr.mxu0 0.0
    %913 = vmatpush1.msra.mxu0 %v129
    %914 = vmatprep.subr.mxu0 0.0
    %915 = vmatpush1.msra.mxu0 %v130
    %916 = vmatprep.subr.mxu0 0.0
    %917 = vmatpush1.msra.mxu0 %v131
    %918 = vmatprep.subr.mxu0 0.0
    %919 = vmatpush1.msra.mxu0 %v132
    %920 = vmatprep.subr.mxu0 0.0
    %921 = vmatpush1.msra.mxu0 %v133
    %922 = vmatprep.subr.mxu0 0.0
    %923 = vmatpush1.msra.mxu0 %v134
    %924 = vmatprep.subr.mxu0 0.0
    %925 = vmatpush1.msra.mxu0 %v135
    %926 = vmatprep.subr.mxu0 0.0
    %927 = vmatpush1.msra.mxu0 %v136
    %928 = vmatprep.subr.mxu0 0.0
    %929 = vmatpush1.msra.mxu0 %v137
    %930 = vmatprep.subr.mxu0 0.0
    %931 = vmatpush1.msra.mxu0 %v138
    %932 = vmatprep.subr.mxu0 0.0
    %933 = vmatpush1.msra.mxu0 %v139
    %934 = vmatprep.subr.mxu0 0.0
    %935 = vmatpush1.msra.mxu0 %v140
    %936 = vmatprep.subr.mxu0 0.0
    %937 = vmatpush1.msra.mxu0 %v141
    %938 = vmatprep.subr.mxu0 0.0
    %939 = vmatpush1.msra.mxu0 %v142
    %940 = vmatprep.subr.mxu0 0.0
    %941 = vmatpush1.msra.mxu0 %v143
    %942 = vmatprep.subr.mxu0 0.0
    %943 = vmatpush1.msra.mxu0 %v144
    %944 = vmatprep.mubr.f32.mxu0 %v879
    %945 = vmatmul.mubr.f32.gmra.mrb[0].mxu0 %v878
    %v946 = vpop.f32.mrb[0].mxu0
    %v947 = vadd.f32 0.0, %v946
    %v948 = vpop.f32.mrb[0].mxu0
    %949 = vdwg.mxu0
    %950 = vadd.xlane.f32.xlu0 %v947
    %v951 = vpop.xlane.xlu0 %950
    %v952 = vmul.f32 %v951, 0.03125
    %v953 = vmul.f32 %v947, %v947
    %954 = vadd.xlane.f32.xlu0 %v953
    %v955 = vpop.xlane.xlu0 %954
    %v956 = vmul.f32 %v955, 0.03125
    %v957 = vmul.f32 %v952, %v952
    %v958 = vsub.f32 %v956, %v957
    %v959 = vmax.f32 %v958, 0.0
    %v960 = vsub.f32 %v947, %v952
    %v961 = vadd.f32 %v959, 1e-05
    %v962 = vrsqrt.pop %v961
    %v963 = vmul.f32 %v960, %v962
    %v964 = vmul.f32 %v963, %v368
    %v965 = vadd.f32 %v964, %v375
    %v966 = vmax.f32 %v965, 0.0
    %967 = vst [vmem:[#allocation11 + $0x18] sm:$0xff] %v966
    %968 = vrot.lane.b32.xlu0 %v87, 118
    %v969 = vpop.permute.xlu0 %968
    %v971 = vsub.f32 %v87, %v969
    %973 = vset.pattern.permute.xlu0 0
    %974 = vperm.xlu0 %973, %v971
    %v975 = vpop.permute.xlu0 %974
    %v977 = vmul.f32 %v975, %v158
    %978 = vset.pattern.permute.xlu0 1
    %979 = vperm.xlu0 %978, %v971
    %v980 = vpop.permute.xlu0 %979
    %v982 = vmul.f32 %v980, %v167
    %v983 = vadd.f32 %v977, %v982
    %v984 = vadd.f32 %v983, %v174
    %v985 = vmax.f32 %v984, 0.0
    %986 = vmatprep.subr.mxu0 0.0
    %987 = vmatpush1.msra.mxu0 %v91
    %988 = vmatprep.subr.mxu0 0.0
    %989 = vmatpush1.msra.mxu0 %v92
    %990 = vmatprep.subr.mxu0 0.0
    %991 = vmatpush1.msra.mxu0 %v93
    %992 = vmatprep.subr.mxu0 0.0
    %993 = vmatpush1.msra.mxu0 %v94
    %994 = vmatprep.subr.mxu0 0.0
    %995 = vmatpush1.msra.mxu0 %v95
    %996 = vmatprep.subr.mxu0 0.0
    %997 = vmatpush1.msra.mxu0 %v96
    %998 = vmatprep.subr.mxu0 0.0
    %999 = vmatpush1.msra.mxu0 %v97
    %1000 = vmatprep.subr.mxu0 0.0
    %1001 = vmatpush1.msra.mxu0 %v98
    %1002 = vmatprep.subr.mxu0 0.0
    %1003 = vmatpush1.msra.mxu0 %v99
    %1004 = vmatprep.subr.mxu0 0.0
    %1005 = vmatpush1.msra.mxu0 %v100
    %1006 = vmatprep.subr.mxu0 0.0
    %1007 = vmatpush1.msra.mxu0 %v101
    %1008 = vmatprep.subr.mxu0 0.0
    %1009 = vmatpush1.msra.mxu0 %v102
    %1010 = vmatprep.subr.mxu0 0.0
    %1011 = vmatpush1.msra.mxu0 %v103
    %1012 = vmatprep.subr.mxu0 0.0
    %1013 = vmatpush1.msra.mxu0 %v104
    %1014 = vmatprep.subr.mxu0 0.0
    %1015 = vmatpush1.msra.mxu0 %v105
    %1016 = vmatprep.subr.mxu0 0.0
    %1017 = vmatpush1.msra.mxu0 %v106
    %1018 = vmatprep.subr.mxu0 0.0
    %1019 = vmatpush1.msra.mxu0 0.0
    %1020 = vmatprep.subr.mxu0 0.0
    %1021 = vmatpush1.msra.mxu0 0.0
    %1022 = vmatprep.subr.mxu0 0.0
    %1023 = vmatpush1.msra.mxu0 0.0
    %1024 = vmatprep.subr.mxu0 0.0
    %1025 = vmatpush1.msra.mxu0 0.0
    %1026 = vmatprep.subr.mxu0 0.0
    %1027 = vmatpush1.msra.mxu0 0.0
    %1028 = vmatprep.subr.mxu0 0.0
    %1029 = vmatpush1.msra.mxu0 0.0
    %1030 = vmatprep.subr.mxu0 0.0
    %1031 = vmatpush1.msra.mxu0 0.0
    %1032 = vmatprep.subr.mxu0 0.0
    %1033 = vmatpush1.msra.mxu0 0.0
    %1034 = vmatprep.subr.mxu0 0.0
    %1035 = vmatpush1.msra.mxu0 0.0
    %1036 = vmatprep.subr.mxu0 0.0
    %1037 = vmatpush1.msra.mxu0 0.0
    %1038 = vmatprep.subr.mxu0 0.0
    %1039 = vmatpush1.msra.mxu0 0.0
    %1040 = vmatprep.subr.mxu0 0.0
    %1041 = vmatpush1.msra.mxu0 0.0
    %1042 = vmatprep.subr.mxu0 0.0
    %1043 = vmatpush1.msra.mxu0 0.0
    %1044 = vmatprep.subr.mxu0 0.0
    %1045 = vmatpush1.msra.mxu0 0.0
    %1046 = vmatprep.subr.mxu0 0.0
    %1047 = vmatpush1.msra.mxu0 0.0
    %1048 = vmatprep.subr.mxu0 0.0
    %1049 = vmatpush1.msra.mxu0 0.0
    %1050 = vmatprep.mubr.f32.mxu0 0.0
    %1051 = vmatmul.mubr.f32.gmra.mrb[0].mxu0 %v985
    %v1052 = vpop.f32.mrb[0].mxu0
    %v1053 = vadd.f32 0.0, %v1052
    %v1054 = vpop.f32.mrb[0].mxu0
    %1055 = vdwg.mxu0
    %1056 = vadd.xlane.f32.xlu0 %v1053
    %v1057 = vpop.xlane.xlu0 %1056
    %v1058 = vmul.f32 %v1057, 0.03125
    %v1059 = vmul.f32 %v1053, %v1053
    %1060 = vadd.xlane.f32.xlu0 %v1059
    %v1061 = vpop.xlane.xlu0 %1060
    %v1062 = vmul.f32 %v1061, 0.03125
    %v1063 = vmul.f32 %v1058, %v1058
    %v1064 = vsub.f32 %v1062, %v1063
    %v1065 = vmax.f32 %v1064, 0.0
    %v1066 = vsub.f32 %v1053, %v1058
    %v1067 = vadd.f32 %v1065, 1e-05
    %v1068 = vrsqrt.pop %v1067
    %v1069 = vmul.f32 %v1066, %v1068
    %v1070 = vmul.f32 %v1069, %v266
    %v1071 = vadd.f32 %v1070, %v273
    %v1072 = vmax.f32 %v1071, 0.0
    %1073 = vst [vmem:[#allocation2] sm:$0xff] %v1072
    %v1074 = vld [vmem:[#allocation2] sm:$0xff]
    %v1075 = vld [vmem:[#allocation2 + $0x8] sm:$0xff]
    %1076 = vmatprep.subr.mxu0 0.0
    %1077 = vmatpush1.msra.mxu0 %v113
    %1078 = vmatprep.subr.mxu0 0.0
    %1079 = vmatpush1.msra.mxu0 %v114
    %1080 = vmatprep.subr.mxu0 0.0
    %1081 = vmatpush1.msra.mxu0 %v115
    %1082 = vmatprep.subr.mxu0 0.0
    %1083 = vmatpush1.msra.mxu0 %v116
    %1084 = vmatprep.subr.mxu0 0.0
    %1085 = vmatpush1.msra.mxu0 %v117
    %1086 = vmatprep.subr.mxu0 0.0
    %1087 = vmatpush1.msra.mxu0 %v118
    %1088 = vmatprep.subr.mxu0 0.0
    %1089 = vmatpush1.msra.mxu0 %v119
    %1090 = vmatprep.subr.mxu0 0.0
    %1091 = vmatpush1.msra.mxu0 %v120
    %1092 = vmatprep.subr.mxu0 0.0
    %1093 = vmatpush1.msra.mxu0 %v121
    %1094 = vmatprep.subr.mxu0 0.0
    %1095 = vmatpush1.msra.mxu0 %v122
    %1096 = vmatprep.subr.mxu0 0.0
    %1097 = vmatpush1.msra.mxu0 %v123
    %1098 = vmatprep.subr.mxu0 0.0
    %1099 = vmatpush1.msra.mxu0 %v124
    %1100 = vmatprep.subr.mxu0 0.0
    %1101 = vmatpush1.msra.mxu0 %v125
    %1102 = vmatprep.subr.mxu0 0.0
    %1103 = vmatpush1.msra.mxu0 %v126
    %1104 = vmatprep.subr.mxu0 0.0
    %1105 = vmatpush1.msra.mxu0 %v127
    %1106 = vmatprep.subr.mxu0 0.0
    %1107 = vmatpush1.msra.mxu0 %v128
    %1108 = vmatprep.subr.mxu0 0.0
    %1109 = vmatpush1.msra.mxu0 %v129
    %1110 = vmatprep.subr.mxu0 0.0
    %1111 = vmatpush1.msra.mxu0 %v130
    %1112 = vmatprep.subr.mxu0 0.0
    %1113 = vmatpush1.msra.mxu0 %v131
    %1114 = vmatprep.subr.mxu0 0.0
    %1115 = vmatpush1.msra.mxu0 %v132
    %1116 = vmatprep.subr.mxu0 0.0
    %1117 = vmatpush1.msra.mxu0 %v133
    %1118 = vmatprep.subr.mxu0 0.0
    %1119 = vmatpush1.msra.mxu0 %v134
    %1120 = vmatprep.subr.mxu0 0.0
    %1121 = vmatpush1.msra.mxu0 %v135
    %1122 = vmatprep.subr.mxu0 0.0
    %1123 = vmatpush1.msra.mxu0 %v136
    %1124 = vmatprep.subr.mxu0 0.0
    %1125 = vmatpush1.msra.mxu0 %v137
    %1126 = vmatprep.subr.mxu0 0.0
    %1127 = vmatpush1.msra.mxu0 %v138
    %1128 = vmatprep.subr.mxu0 0.0
    %1129 = vmatpush1.msra.mxu0 %v139
    %1130 = vmatprep.subr.mxu0 0.0
    %1131 = vmatpush1.msra.mxu0 %v140
    %1132 = vmatprep.subr.mxu0 0.0
    %1133 = vmatpush1.msra.mxu0 %v141
    %1134 = vmatprep.subr.mxu0 0.0
    %1135 = vmatpush1.msra.mxu0 %v142
    %1136 = vmatprep.subr.mxu0 0.0
    %1137 = vmatpush1.msra.mxu0 %v143
    %1138 = vmatprep.subr.mxu0 0.0
    %1139 = vmatpush1.msra.mxu0 %v144
    %1140 = vmatprep.mubr.f32.mxu0 %v1075
    %1141 = vmatmul.mubr.f32.gmra.mrb[0].mxu0 %v1074
    %v1142 = vpop.f32.mrb[0].mxu0
    %v1143 = vadd.f32 0.0, %v1142
    %v1144 = vpop.f32.mrb[0].mxu0
    %1145 = vdwg.mxu0
    %1146 = vadd.xlane.f32.xlu0 %v1143
    %v1147 = vpop.xlane.xlu0 %1146
    %v1148 = vmul.f32 %v1147, 0.03125
    %v1149 = vmul.f32 %v1143, %v1143
    %1150 = vadd.xlane.f32.xlu0 %v1149
    %v1151 = vpop.xlane.xlu0 %1150
    %v1152 = vmul.f32 %v1151, 0.03125
    %v1153 = vmul.f32 %v1148, %v1148
    %v1154 = vsub.f32 %v1152, %v1153
    %v1155 = vmax.f32 %v1154, 0.0
    %v1156 = vsub.f32 %v1143, %v1148
    %v1157 = vadd.f32 %v1155, 1e-05
    %v1158 = vrsqrt.pop %v1157
    %v1159 = vmul.f32 %v1156, %v1158
    %v1160 = vmul.f32 %v1159, %v368
    %v1161 = vadd.f32 %v1160, %v375
    %v1162 = vmax.f32 %v1161, 0.0
    %1163 = vst [vmem:[#allocation11 + $0x20] sm:$0xff] %v1162
    %1164 = vrot.lane.b32.xlu0 %v87, 116
    %v1165 = vpop.permute.xlu0 %1164
    %v1167 = vsub.f32 %v87, %v1165
    %1169 = vset.pattern.permute.xlu0 0
    %1170 = vperm.xlu0 %1169, %v1167
    %v1171 = vpop.permute.xlu0 %1170
    %v1173 = vmul.f32 %v1171, %v158
    %1174 = vset.pattern.permute.xlu0 1
    %1175 = vperm.xlu0 %1174, %v1167
    %v1176 = vpop.permute.xlu0 %1175
    %v1178 = vmul.f32 %v1176, %v167
    %v1179 = vadd.f32 %v1173, %v1178
    %v1180 = vadd.f32 %v1179, %v174
    %v1181 = vmax.f32 %v1180, 0.0
    %1182 = vmatprep.subr.mxu0 0.0
    %1183 = vmatpush1.msra.mxu0 %v91
    %1184 = vmatprep.subr.mxu0 0.0
    %1185 = vmatpush1.msra.mxu0 %v92
    %1186 = vmatprep.subr.mxu0 0.0
    %1187 = vmatpush1.msra.mxu0 %v93
    %1188 = vmatprep.subr.mxu0 0.0
    %1189 = vmatpush1.msra.mxu0 %v94
    %1190 = vmatprep.subr.mxu0 0.0
    %1191 = vmatpush1.msra.mxu0 %v95
    %1192 = vmatprep.subr.mxu0 0.0
    %1193 = vmatpush1.msra.mxu0 %v96
    %1194 = vmatprep.subr.mxu0 0.0
    %1195 = vmatpush1.msra.mxu0 %v97
    %1196 = vmatprep.subr.mxu0 0.0
    %1197 = vmatpush1.msra.mxu0 %v98
    %1198 = vmatprep.subr.mxu0 0.0
    %1199 = vmatpush1.msra.mxu0 %v99
    %1200 = vmatprep.subr.mxu0 0.0
    %1201 = vmatpush1.msra.mxu0 %v100
    %1202 = vmatprep.subr.mxu0 0.0
    %1203 = vmatpush1.msra.mxu0 %v101
    %1204 = vmatprep.subr.mxu0 0.0
    %1205 = vmatpush1.msra.mxu0 %v102
    %1206 = vmatprep.subr.mxu0 0.0
    %1207 = vmatpush1.msra.mxu0 %v103
    %1208 = vmatprep.subr.mxu0 0.0
    %1209 = vmatpush1.msra.mxu0 %v104
    %1210 = vmatprep.subr.mxu0 0.0
    %1211 = vmatpush1.msra.mxu0 %v105
    %1212 = vmatprep.subr.mxu0 0.0
    %1213 = vmatpush1.msra.mxu0 %v106
    %1214 = vmatprep.subr.mxu0 0.0
    %1215 = vmatpush1.msra.mxu0 0.0
    %1216 = vmatprep.subr.mxu0 0.0
    %1217 = vmatpush1.msra.mxu0 0.0
    %1218 = vmatprep.subr.mxu0 0.0
    %1219 = vmatpush1.msra.mxu0 0.0
    %1220 = vmatprep.subr.mxu0 0.0
    %1221 = vmatpush1.msra.mxu0 0.0
    %1222 = vmatprep.subr.mxu0 0.0
    %1223 = vmatpush1.msra.mxu0 0.0
    %1224 = vmatprep.subr.mxu0 0.0
    %1225 = vmatpush1.msra.mxu0 0.0
    %1226 = vmatprep.subr.mxu0 0.0
    %1227 = vmatpush1.msra.mxu0 0.0
    %1228 = vmatprep.subr.mxu0 0.0
    %1229 = vmatpush1.msra.mxu0 0.0
    %1230 = vmatprep.subr.mxu0 0.0
    %1231 = vmatpush1.msra.mxu0 0.0
    %1232 = vmatprep.subr.mxu0 0.0
    %1233 = vmatpush1.msra.mxu0 0.0
    %1234 = vmatprep.subr.mxu0 0.0
    %1235 = vmatpush1.msra.mxu0 0.0
    %1236 = vmatprep.subr.mxu0 0.0
    %1237 = vmatpush1.msra.mxu0 0.0
    %1238 = vmatprep.subr.mxu0 0.0
    %1239 = vmatpush1.msra.mxu0 0.0
    %1240 = vmatprep.subr.mxu0 0.0
    %1241 = vmatpush1.msra.mxu0 0.0
    %1242 = vmatprep.subr.mxu0 0.0
    %1243 = vmatpush1.msra.mxu0 0.0
    %1244 = vmatprep.subr.mxu0 0.0
    %1245 = vmatpush1.msra.mxu0 0.0
    %1246 = vmatprep.mubr.f32.mxu0 0.0
    %1247 = vmatmul.mubr.f32.gmra.mrb[0].mxu0 %v1181
    %v1248 = vpop.f32.mrb[0].mxu0
    %v1249 = vadd.f32 0.0, %v1248
    %v1250 = vpop.f32.mrb[0].mxu0
    %1251 = vdwg.mxu0
    %1252 = vadd.xlane.f32.xlu0 %v1249
    %v1253 = vpop.xlane.xlu0 %1252
    %v1254 = vmul.f32 %v1253, 0.03125
    %v1255 = vmul.f32 %v1249, %v1249
    %1256 = vadd.xlane.f32.xlu0 %v1255
    %v1257 = vpop.xlane.xlu0 %1256
    %v1258 = vmul.f32 %v1257, 0.03125
    %v1259 = vmul.f32 %v1254, %v1254
    %v1260 = vsub.f32 %v1258, %v1259
    %v1261 = vmax.f32 %v1260, 0.0
    %v1262 = vsub.f32 %v1249, %v1254
    %v1263 = vadd.f32 %v1261, 1e-05
    %v1264 = vrsqrt.pop %v1263
    %v1265 = vmul.f32 %v1262, %v1264
    %v1266 = vmul.f32 %v1265, %v266
    %v1267 = vadd.f32 %v1266, %v273
    %v1268 = vmax.f32 %v1267, 0.0
    %1269 = vst [vmem:[#allocation2] sm:$0xff] %v1268
    %v1270 = vld [vmem:[#allocation2] sm:$0xff]
    %v1271 = vld [vmem:[#allocation2 + $0x8] sm:$0xff]
    %1272 = vmatprep.subr.mxu0 0.0
    %1273 = vmatpush1.msra.mxu0 %v113
    %1274 = vmatprep.subr.mxu0 0.0
    %1275 = vmatpush1.msra.mxu0 %v114
    %1276 = vmatprep.subr.mxu0 0.0
    %1277 = vmatpush1.msra.mxu0 %v115
    %1278 = vmatprep.subr.mxu0 0.0
    %1279 = vmatpush1.msra.mxu0 %v116
    %1280 = vmatprep.subr.mxu0 0.0
    %1281 = vmatpush1.msra.mxu0 %v117
    %1282 = vmatprep.subr.mxu0 0.0
    %1283 = vmatpush1.msra.mxu0 %v118
    %1284 = vmatprep.subr.mxu0 0.0
    %1285 = vmatpush1.msra.mxu0 %v119
    %1286 = vmatprep.subr.mxu0 0.0
    %1287 = vmatpush1.msra.mxu0 %v120
    %1288 = vmatprep.subr.mxu0 0.0
    %1289 = vmatpush1.msra.mxu0 %v121
    %1290 = vmatprep.subr.mxu0 0.0
    %1291 = vmatpush1.msra.mxu0 %v122
    %1292 = vmatprep.subr.mxu0 0.0
    %1293 = vmatpush1.msra.mxu0 %v123
    %1294 = vmatprep.subr.mxu0 0.0
    %1295 = vmatpush1.msra.mxu0 %v124
    %1296 = vmatprep.subr.mxu0 0.0
    %1297 = vmatpush1.msra.mxu0 %v125
    %1298 = vmatprep.subr.mxu0 0.0
    %1299 = vmatpush1.msra.mxu0 %v126
    %1300 = vmatprep.subr.mxu0 0.0
    %1301 = vmatpush1.msra.mxu0 %v127
    %1302 = vmatprep.subr.mxu0 0.0
    %1303 = vmatpush1.msra.mxu0 %v128
    %1304 = vmatprep.subr.mxu0 0.0
    %1305 = vmatpush1.msra.mxu0 %v129
    %1306 = vmatprep.subr.mxu0 0.0
    %1307 = vmatpush1.msra.mxu0 %v130
    %1308 = vmatprep.subr.mxu0 0.0
    %1309 = vmatpush1.msra.mxu0 %v131
    %1310 = vmatprep.subr.mxu0 0.0
    %1311 = vmatpush1.msra.mxu0 %v132
    %1312 = vmatprep.subr.mxu0 0.0
    %1313 = vmatpush1.msra.mxu0 %v133
    %1314 = vmatprep.subr.mxu0 0.0
    %1315 = vmatpush1.msra.mxu0 %v134
    %1316 = vmatprep.subr.mxu0 0.0
    %1317 = vmatpush1.msra.mxu0 %v135
    %1318 = vmatprep.subr.mxu0 0.0
    %1319 = vmatpush1.msra.mxu0 %v136
    %1320 = vmatprep.subr.mxu0 0.0
    %1321 = vmatpush1.msra.mxu0 %v137
    %1322 = vmatprep.subr.mxu0 0.0
    %1323 = vmatpush1.msra.mxu0 %v138
    %1324 = vmatprep.subr.mxu0 0.0
    %1325 = vmatpush1.msra.mxu0 %v139
    %1326 = vmatprep.subr.mxu0 0.0
    %1327 = vmatpush1.msra.mxu0 %v140
    %1328 = vmatprep.subr.mxu0 0.0
    %1329 = vmatpush1.msra.mxu0 %v141
    %1330 = vmatprep.subr.mxu0 0.0
    %1331 = vmatpush1.msra.mxu0 %v142
    %1332 = vmatprep.subr.mxu0 0.0
    %1333 = vmatpush1.msra.mxu0 %v143
    %1334 = vmatprep.subr.mxu0 0.0
    %1335 = vmatpush1.msra.mxu0 %v144
    %1336 = vmatprep.mubr.f32.mxu0 %v1271
    %1337 = vmatmul.mubr.f32.gmra.mrb[0].mxu0 %v1270
    %v1338 = vpop.f32.mrb[0].mxu0
    %v1339 = vadd.f32 0.0, %v1338
    %v1340 = vpop.f32.mrb[0].mxu0
    %1341 = vdwg.mxu0
    %1342 = vadd.xlane.f32.xlu0 %v1339
    %v1343 = vpop.xlane.xlu0 %1342
    %v1344 = vmul.f32 %v1343, 0.03125
    %v1345 = vmul.f32 %v1339, %v1339
    %1346 = vadd.xlane.f32.xlu0 %v1345
    %v1347 = vpop.xlane.xlu0 %1346
    %v1348 = vmul.f32 %v1347, 0.03125
    %v1349 = vmul.f32 %v1344, %v1344
    %v1350 = vsub.f32 %v1348, %v1349
    %v1351 = vmax.f32 %v1350, 0.0
    %v1352 = vsub.f32 %v1339, %v1344
    %v1353 = vadd.f32 %v1351, 1e-05
    %v1354 = vrsqrt.pop %v1353
    %v1355 = vmul.f32 %v1352, %v1354
    %v1356 = vmul.f32 %v1355, %v368
    %v1357 = vadd.f32 %v1356, %v375
    %v1358 = vmax.f32 %v1357, 0.0
    %1359 = vst [vmem:[#allocation11 + $0x28] sm:$0xff] %v1358
    // Predicated region
    $region58: #{tpu_custom_call.1} parent=1 // pred_check
      _
    $region59: #{tpu_custom_call.1} parent=1 // pred_check_branch
      %1361 = sbr.rel (0) target = $region61
    $region60: #{tpu_custom_call.1} parent=1 // pred_region
      %s1363 = ssub.s32 768, 768
      %1364 = vsyncadd [#allocation5], %s1363
      %s1366 = sshll.u32 [#allocation11], 4
      %s1367 = int_to_ptr.vmem [resolvable:$true] %s1366
      %1369 = dma.vmem_to_hbm [thread:$0]  %s1367, 768, %s10, [#allocation5]
    $region61: #{tpu_custom_call.1} parent=1 // pred_fallthru
      _
    // Predicated region
    $region62: #{tpu_custom_call.1} parent=1 // pred_check
      _
    $region63: #{tpu_custom_call.1} parent=1 // pred_check_branch
      %1371 = sbr.rel (0) target = $region65
    $region64: #{tpu_custom_call.1} parent=1 // pred_region
      %1372 = dma.done [#allocation5], 768
    $region65: #{tpu_custom_call.1} parent=1 // pred_fallthru
      _
    %1373 = vsyncpa [#allocation4], 1
    %1374 = vsyncpa [#allocation7], 1
    %1375 = vsyncpa [#allocation10], 1
    %1376 = vsyncpa [#allocation5], 1

</llo_original>
